<compile_context>
chip_gen: v6e
topology: v6e:2x2x1
jax: 0.10.0
libtpu: 0.0.40
codegen_flags: <defaults>
</compile_context>

<pallas_src>
import numpy as np
import jax
import jax.numpy as jnp
from jax.experimental import pallas as pl
from jax.experimental.pallas import tpu as pltpu


# ----------------------------------------------------------------------------
# Static configuration (small shapes consistent with the module)
# ----------------------------------------------------------------------------
DEPTH_H = DEPTH_W = 16          # depth image size
V_NUM = H_NUM = 4               # lattice grid = depth / 4 (two stride-2 convs)
PIX = V_NUM * H_NUM             # 16 lattice pixels
CONV1_HW = DEPTH_H // 2         # conv1 output spatial (8)
C1 = 16                         # backbone mid channels
HID = 32                        # hidden_state
OBS_C = 9                       # state observation channels
ACT_DIM = 9                     # action_dim (tanh split uses output[:, :9])
NA = (64, 32)                   # net_arch
OUT_C = 10                      # (action_dim + 1) * vel_num * radio_num
PATCH = 49                      # 7x7 depth patch per lattice pixel
K1 = 9 * C1                     # fused conv2 contraction depth (144)
TB_MAX = 64                     # max samples folded into one grid step


# ----------------------------------------------------------------------------
# Fused Pallas kernel: backbone convs + concat + header + tanh/relu split
# ----------------------------------------------------------------------------
def _yopo_fused_kernel(x1_ref, obs_ref,
                       w1p_ref, b1t_ref, w2f_ref, b2p_ref,
                       w1o_ref, w1f_ref, b1h_ref,
                       w2h_ref, b2h_ref, w3h_ref, b3h_ref,
                       o_ref):
    f32 = jnp.float32
    m = x1_ref.shape[0]                     # TB * PIX (static)
    tb = m // PIX

    # ---- conv1 (3x3 s2 p1, 1->C1) + conv2-tap replication: ONE MXU matmul ---
    # w1p is a block-diagonal patch weight: column group t*C1..t*C1+15 holds the
    # conv1 weights placed at the window offsets of conv2-tap t, so the result
    # is directly conv2's (tap, channel) im2col, M rows = (sample, lattice pix).
    z = jnp.dot(x1_ref[...], w1p_ref[...], preferred_element_type=f32)   # (m,144)
    a = jnp.maximum(z + b1t_ref[...], 0.0)

    # ---- conv2 (3x3 s2 p1, C1->HID): single K=144 contraction ---------------
    # Rows of `a` that correspond to conv2's zero padding are relu(b1) instead
    # of 0; b2p (per lattice pixel) subtracts exactly that contribution, so the
    # result matches the padded convolution bit-for-math.
    y = jnp.dot(a, w2f_ref[...], preferred_element_type=f32)             # (m,HID)
    y = y.reshape(tb, PIX, HID) + b2p_ref[...]          # broadcast (PIX,HID)
    feat2 = jnp.maximum(y, 0.0).reshape(m, HID)

    # ---- header: cat(obs, depth_feature) -> three 1x1 convs -----------------
    # The channel concat is folded into layer 1 by splitting its weight into
    # the obs part (9 ch) and the depth-feature part (HID ch).
    h = (jnp.dot(obs_ref[...], w1o_ref[...], preferred_element_type=f32)
         + jnp.dot(feat2, w1f_ref[...], preferred_element_type=f32)
         + b1h_ref[...])
    h = jnp.maximum(h, 0.0)
    h = jnp.dot(h, w2h_ref[...], preferred_element_type=f32) + b2h_ref[...]
    h = jnp.maximum(h, 0.0)
    out = jnp.dot(h, w3h_ref[...], preferred_element_type=f32) + b3h_ref[...]

    # tanh on channels [:9] (endstate), relu on the rest (score) - matches the
    # module's output[:, :9] / output[:, 9:] split exactly.  (tanh is evaluated
    # on all 10 lanes of the single vreg tile; slicing would not be cheaper.)
    col = jax.lax.broadcasted_iota(jnp.int32, out.shape, 1)
    o_ref[...] = jnp.where(col < ACT_DIM, jnp.tanh(out), jnp.maximum(out, 0.0))


# ----------------------------------------------------------------------------
# One-time weight repack (host side, numpy) into the kernel's fused layout
# ----------------------------------------------------------------------------
def pack_params(params):
    c1 = params["bb_w1"].shape[0]
    hid = params["bb_w2"].shape[0]
    w1 = np.asarray(params["bb_w1"], np.float32).reshape(c1, 9)   # [(dh,dw) -> c]
    b1 = np.asarray(params["bb_b1"], np.float32)
    w2 = np.asarray(params["bb_w2"], np.float32)                  # (HID,C1,3,3)
    b2 = np.asarray(params["bb_b2"], np.float32)

    # conv1 block-diagonal patch weight (49, 9*C1):
    #   w1p[(2*di+dh)*7 + (2*dj+dw), t*C1 + c] = w1[c, (dh,dw)],  t = di*3+dj
    w1p = np.zeros((PATCH, 9 * c1), np.float32)
    for di in range(3):
        for dj in range(3):
            t = di * 3 + dj
            for dh in range(3):
                for dw in range(3):
                    w1p[(2 * di + dh) * 7 + (2 * dj + dw),
                        t * c1:(t + 1) * c1] = w1[:, dh * 3 + dw]
    b1t = np.tile(b1, 9).reshape(1, 9 * c1)

    # conv2 fused weight (9*C1, HID): rows ordered (tap, channel)
    w2f = w2.transpose(2, 3, 1, 0).reshape(9 * c1, hid)

    # per-lattice-pixel conv2 bias with the zero-padding correction folded in
    rb1 = np.maximum(b1, 0.0)
    corr = np.stack([rb1 @ w2f[t * c1:(t + 1) * c1] for t in range(9)], 0)
    b2p = np.zeros((PIX, hid), np.float32)
    for i in range(V_NUM):
        for j in range(H_NUM):
            p = i * H_NUM + j
            b2p[p] = b2
            for di in range(3):
                for dj in range(3):
                    qi, qj = 2 * i + di - 1, 2 * j + dj - 1
                    if not (0 <= qi < CONV1_HW and 0 <= qj < CONV1_HW):
                        b2p[p] -= corr[di * 3 + dj]

    return {
        "w1p": jnp.asarray(w1p), "b1t": jnp.asarray(b1t),
        "w2f": jnp.asarray(w2f), "b2p": jnp.asarray(b2p),
        "w1o": params["h_w1"][:OBS_C],      # (9,   NA0)  obs part of layer 1
        "w1f": params["h_w1"][OBS_C:],      # (HID, NA0)  depth-feature part
        "b1h": params["h_b1"],
        "w2h": params["h_w2"], "b2h": params["h_b2"],
        "w3h": params["h_w3"], "b3h": params["h_b3"],
    }


# ----------------------------------------------------------------------------
# Wrapper: boundary layout plumbing + single batch-tiled pallas_call
# ----------------------------------------------------------------------------
def _round_up(x, m):
    return (x + m - 1) // m * m


def _cost_estimate(total_rows):
    macs = (PATCH * K1 + K1 * HID
            + OBS_C * NA[0] + HID * NA[0] + NA[0] * NA[1] + NA[1] * OUT_C)
    w_elems = (PATCH * K1 + K1 + K1 * HID + PIX * HID
               + OBS_C * NA[0] + HID * NA[0] + NA[0]
               + NA[0] * NA[1] + NA[1] + NA[1] * OUT_C + OUT_C)
    io_elems = total_rows * (PATCH + OBS_C + OUT_C)
    return pl.CostEstimate(flops=2 * total_rows * macs,
                           transcendentals=total_rows * OUT_C,
                           bytes_accessed=4 * (io_elems + w_elems))


@jax.jit
def yopo_forward(kparams, depth, obs):
    """depth: (B,1,16,16)  obs: (B,9,V,H)  ->  (B,10,V,H)  (NCHW, f32)."""
    B = depth.shape[0]
    TB = min(TB_MAX, _round_up(B, 8))     # samples per grid step (>=8 => M>=128)
    Bp = _round_up(B, TB)                 # pad batch so the last tile is full
    M = TB * PIX                          # matmul rows per grid step

    # --- cheap boundary layout plumbing (pad + static strided slices) --------
    # 7x7 depth patch (stride 4, pad 3) per lattice pixel == full receptive
    # field of one conv2 output pixel.  Rows whose conv1 pixel falls in conv2's
    # zero padding only touch the pad-3 border and thus come out all-zero.
    xp = jnp.pad(depth[:, 0], ((0, 0), (3, 3), (3, 3)))              # (B,22,22)
    cols = [xp[:, r:r + 13:4, c:c + 13:4]
            for r in range(7) for c in range(7)]                     # 49x(B,4,4)
    x1 = jnp.stack(cols, axis=-1).reshape(B * PIX, PATCH)            # (B*16,49)
    obs_pix = obs.transpose(0, 2, 3, 1).reshape(B * PIX, OBS_C)      # (B*16,9)

    pad_rows = (Bp - B) * PIX
    if pad_rows:
        x1 = jnp.pad(x1, ((0, pad_rows), (0, 0)))
        obs_pix = jnp.pad(obs_pix, ((0, pad_rows), (0, 0)))

    def wspec(shape):
        return pl.BlockSpec(shape, lambda b: (0, 0))   # VMEM-resident weights

    out = pl.pallas_call(
        _yopo_fused_kernel,
        out_shape=jax.ShapeDtypeStruct((Bp * PIX, OUT_C), jnp.float32),
        grid=(Bp // TB,),
        in_specs=[
            pl.BlockSpec((M, PATCH), lambda b: (b, 0)),
            pl.BlockSpec((M, OBS_C), lambda b: (b, 0)),
            wspec((PATCH, K1)), wspec((1, K1)),
            wspec((K1, HID)), wspec((PIX, HID)),
            wspec((OBS_C, NA[0])), wspec((HID, NA[0])), wspec((1, NA[0])),
            wspec((NA[0], NA[1])), wspec((1, NA[1])),
            wspec((NA[1], OUT_C)), wspec((1, OUT_C)),
        ],
        out_specs=pl.BlockSpec((M, OUT_C), lambda b: (b, 0)),
        compiler_params=pltpu.CompilerParams(
            dimension_semantics=("parallel",),          # v7x: tiles on both TCs
            vmem_limit_bytes=32 * 1024 * 1024),
        cost_estimate=_cost_estimate(Bp * PIX),
    )(x1, obs_pix,
      kparams["w1p"], kparams["b1t"], kparams["w2f"], kparams["b2p"],
      kparams["w1o"], kparams["w1f"], kparams["b1h"],
      kparams["w2h"], kparams["b2h"], kparams["w3h"], kparams["b3h"])

    # drop batch padding; single NCHW transpose at the boundary
    out = out[:B * PIX].reshape(B, V_NUM, H_NUM, OUT_C)
    return out.transpose(0, 3, 1, 2)


# ----------------------------------------------------------------------------
# Pure-JAX reference (for correctness check)
# ----------------------------------------------------------------------------
def _conv_ref(x, w, b, stride, pad):
    y = jax.lax.conv_general_dilated(
        x, w, (stride, stride), [(pad, pad), (pad, pad)],
        dimension_numbers=("NCHW", "OIHW", "NCHW"))
    return y + b[None, :, None, None]


def yopo_forward_ref(params, depth, obs):
    f = jax.nn.relu(_conv_ref(depth, params["bb_w1"], params["bb_b1"], 2, 1))
    f = jax.nn.relu(_conv_ref(f, params["bb_w2"], params["bb_b2"], 2, 1))
    x = jnp.concatenate([obs, f], axis=1)
    h = jax.nn.relu(jnp.einsum("nchw,co->nohw", x, params["h_w1"])
                    + params["h_b1"][0][None, :, None, None])
    h = jax.nn.relu(jnp.einsum("nchw,co->nohw", h, params["h_w2"])
                    + params["h_b2"][0][None, :, None, None])
    o = (jnp.einsum("nchw,co->nohw", h, params["h_w3"])
         + params["h_b3"][0][None, :, None, None])
    return jnp.concatenate([jnp.tanh(o[:, :ACT_DIM]),
                            jax.nn.relu(o[:, ACT_DIM:])], axis=1)


# ----------------------------------------------------------------------------
# Parameter construction (deterministic, synthetic, PyTorch-like layout)
# ----------------------------------------------------------------------------
def init_params(key):
    ks = jax.random.split(key, 10)

    def conv_w(k, cout, cin, ksz):
        fan_in = cin * ksz * ksz
        return jax.random.normal(k, (cout, cin, ksz, ksz), jnp.float32) / np.sqrt(fan_in)

    def bias(k, cout):
        return 0.01 * jax.random.normal(k, (cout,), jnp.float32)

    input_dim = HID + OBS_C
    return {
        # backbone: 1 -> C1 -> HID, 3x3 stride 2 (representative YopoBackbone)
        "bb_w1": conv_w(ks[0], C1, 1, 3), "bb_b1": bias(ks[1], C1),
        "bb_w2": conv_w(ks[2], HID, C1, 3), "bb_b2": bias(ks[3], HID),
        # header 1x1 convs stored as (cin, cout) matmul weights
        "h_w1": conv_w(ks[4], NA[0], input_dim, 1).reshape(NA[0], input_dim).T,
        "h_b1": bias(ks[5], NA[0]).reshape(1, NA[0]),
        "h_w2": conv_w(ks[6], NA[1], NA[0], 1).reshape(NA[1], NA[0]).T,
        "h_b2": bias(ks[7], NA[1]).reshape(1, NA[1]),
        "h_w3": conv_w(ks[8], OUT_C, NA[1], 1).reshape(OUT_C, NA[1]).T,
        "h_b3": bias(ks[9], OUT_C).reshape(1, OUT_C),
    }


# ----------------------------------------------------------------------------
if __name__ == "__main__":
    batch = 2

    key = jax.random.PRNGKey(0)
    k_p, k_d, k_o = jax.random.split(key, 3)

    params = init_params(k_p)
    depth = jax.random.uniform(k_d, (batch, 1, DEPTH_H, DEPTH_W), jnp.float32)
    obs = jax.random.normal(k_o, (batch, OBS_C, V_NUM, H_NUM), jnp.float32)

    kparams = pack_params(params)
    out = yopo_forward(kparams, depth, obs)
    out = jax.block_until_ready(out)

    assert out.shape == (batch, OUT_C, V_NUM, H_NUM), out.shape
    ref = yopo_forward_ref(params, depth, obs)
    np.testing.assert_allclose(np.asarray(out), np.asarray(ref), rtol=1e-2, atol=1e-2)

    print("KERNEL_OK")
</pallas_src>

<mosaic_0001>
module attributes {stable_mosaic.version = 11 : i64} {
  func.func @_yopo_fused_kernel(%arg0: i32, %arg1: memref<128x49xf32, #tpu.memory_space<vmem>>, %arg2: memref<128x9xf32, #tpu.memory_space<vmem>>, %arg3: memref<49x144xf32, #tpu.memory_space<vmem>>, %arg4: memref<1x144xf32, #tpu.memory_space<vmem>>, %arg5: memref<144x32xf32, #tpu.memory_space<vmem>>, %arg6: memref<16x32xf32, #tpu.memory_space<vmem>>, %arg7: memref<9x64xf32, #tpu.memory_space<vmem>>, %arg8: memref<32x64xf32, #tpu.memory_space<vmem>>, %arg9: memref<1x64xf32, #tpu.memory_space<vmem>>, %arg10: memref<64x32xf32, #tpu.memory_space<vmem>>, %arg11: memref<1x32xf32, #tpu.memory_space<vmem>>, %arg12: memref<32x10xf32, #tpu.memory_space<vmem>>, %arg13: memref<1x10xf32, #tpu.memory_space<vmem>>, %arg14: memref<128x10xf32, #tpu.memory_space<vmem>>) attributes {dimension_semantics = [#tpu.dimension_semantics<parallel>], iteration_bounds = array<i64: 1>, scalar_prefetch = 0 : i64, scratch_operands = 0 : i64, tpu.core_type = #tpu.core_type<tc>, window_params = [{transform_indices = @transform_0, window_bounds = array<i64: 128, 49>}, {transform_indices = @transform_1, window_bounds = array<i64: 128, 9>}, {pipeline_mode = #tpu.pipeline_mode<synchronous>, transform_indices = @transform_2, window_bounds = array<i64: 49, 144>}, {pipeline_mode = #tpu.pipeline_mode<synchronous>, transform_indices = @transform_3, window_bounds = array<i64: 1, 144>}, {pipeline_mode = #tpu.pipeline_mode<synchronous>, transform_indices = @transform_4, window_bounds = array<i64: 144, 32>}, {pipeline_mode = #tpu.pipeline_mode<synchronous>, transform_indices = @transform_5, window_bounds = array<i64: 16, 32>}, {pipeline_mode = #tpu.pipeline_mode<synchronous>, transform_indices = @transform_6, window_bounds = array<i64: 9, 64>}, {pipeline_mode = #tpu.pipeline_mode<synchronous>, transform_indices = @transform_7, window_bounds = array<i64: 32, 64>}, {pipeline_mode = #tpu.pipeline_mode<synchronous>, transform_indices = @transform_8, window_bounds = array<i64: 1, 64>}, {pipeline_mode = #tpu.pipeline_mode<synchronous>, transform_indices = @transform_9, window_bounds = array<i64: 64, 32>}, {pipeline_mode = #tpu.pipeline_mode<synchronous>, transform_indices = @transform_10, window_bounds = array<i64: 1, 32>}, {pipeline_mode = #tpu.pipeline_mode<synchronous>, transform_indices = @transform_11, window_bounds = array<i64: 32, 10>}, {pipeline_mode = #tpu.pipeline_mode<synchronous>, transform_indices = @transform_12, window_bounds = array<i64: 1, 10>}, {transform_indices = @transform_13, window_bounds = array<i64: 128, 10>}]} {
    %c0 = arith.constant 0 : index
    %c0_0 = arith.constant 0 : index
    %0 = vector.load %arg1[%c0, %c0_0] : memref<128x49xf32, #tpu.memory_space<vmem>>, vector<128x49xf32>
    %c0_1 = arith.constant 0 : index
    %c0_2 = arith.constant 0 : index
    %1 = vector.load %arg3[%c0_1, %c0_2] : memref<49x144xf32, #tpu.memory_space<vmem>>, vector<49x144xf32>
    %cst = arith.constant dense<0.000000e+00> : vector<128x144xf32>
    %2 = tpu.matmul %0, %1, %cst {dimension_numbers = #tpu.dot_dimension_numbers<[1], [0], [0], [1], [0, 0, 1, 1], [], []>} : vector<128x49xf32>, vector<49x144xf32>, vector<128x144xf32> -> vector<128x144xf32>
    %c0_3 = arith.constant 0 : index
    %c0_4 = arith.constant 0 : index
    %3 = vector.load %arg4[%c0_3, %c0_4] : memref<1x144xf32, #tpu.memory_space<vmem>>, vector<1x144xf32>
    %4 = vector.broadcast %3 : vector<1x144xf32> to vector<128x144xf32>
    %5 = arith.addf %2, %4 : vector<128x144xf32>
    %cst_5 = arith.constant 0.000000e+00 : f32
    %6 = vector.broadcast %cst_5 : f32 to vector<128x144xf32>
    %7 = arith.maximumf %5, %6 : vector<128x144xf32>
    %c0_6 = arith.constant 0 : index
    %c0_7 = arith.constant 0 : index
    %8 = vector.load %arg5[%c0_6, %c0_7] : memref<144x32xf32, #tpu.memory_space<vmem>>, vector<144x32xf32>
    %cst_8 = arith.constant dense<0.000000e+00> : vector<128x32xf32>
    %9 = tpu.matmul %7, %8, %cst_8 {dimension_numbers = #tpu.dot_dimension_numbers<[1], [0], [0], [1], [0, 0, 1, 1], [], []>} : vector<128x144xf32>, vector<144x32xf32>, vector<128x32xf32> -> vector<128x32xf32>
    %10 = vector.shape_cast %9 : vector<128x32xf32> to vector<8x16x32xf32>
    %c0_9 = arith.constant 0 : index
    %c0_10 = arith.constant 0 : index
    %11 = vector.load %arg6[%c0_9, %c0_10] : memref<16x32xf32, #tpu.memory_space<vmem>>, vector<16x32xf32>
    %12 = vector.shape_cast %11 : vector<16x32xf32> to vector<1x16x32xf32>
    %13 = vector.broadcast %12 : vector<1x16x32xf32> to vector<8x16x32xf32>
    %14 = arith.addf %10, %13 : vector<8x16x32xf32>
    %cst_11 = arith.constant 0.000000e+00 : f32
    %15 = vector.broadcast %cst_11 : f32 to vector<8x16x32xf32>
    %16 = arith.maximumf %14, %15 : vector<8x16x32xf32>
    %17 = vector.shape_cast %16 : vector<8x16x32xf32> to vector<128x32xf32>
    %c0_12 = arith.constant 0 : index
    %c0_13 = arith.constant 0 : index
    %18 = vector.load %arg2[%c0_12, %c0_13] : memref<128x9xf32, #tpu.memory_space<vmem>>, vector<128x9xf32>
    %c0_14 = arith.constant 0 : index
    %c0_15 = arith.constant 0 : index
    %19 = vector.load %arg7[%c0_14, %c0_15] : memref<9x64xf32, #tpu.memory_space<vmem>>, vector<9x64xf32>
    %cst_16 = arith.constant dense<0.000000e+00> : vector<128x64xf32>
    %20 = tpu.matmul %18, %19, %cst_16 {dimension_numbers = #tpu.dot_dimension_numbers<[1], [0], [0], [1], [0, 0, 1, 1], [], []>} : vector<128x9xf32>, vector<9x64xf32>, vector<128x64xf32> -> vector<128x64xf32>
    %c0_17 = arith.constant 0 : index
    %c0_18 = arith.constant 0 : index
    %21 = vector.load %arg8[%c0_17, %c0_18] : memref<32x64xf32, #tpu.memory_space<vmem>>, vector<32x64xf32>
    %cst_19 = arith.constant dense<0.000000e+00> : vector<128x64xf32>
    %22 = tpu.matmul %17, %21, %cst_19 {dimension_numbers = #tpu.dot_dimension_numbers<[1], [0], [0], [1], [0, 0, 1, 1], [], []>} : vector<128x32xf32>, vector<32x64xf32>, vector<128x64xf32> -> vector<128x64xf32>
    %23 = arith.addf %20, %22 : vector<128x64xf32>
    %c0_20 = arith.constant 0 : index
    %c0_21 = arith.constant 0 : index
    %24 = vector.load %arg9[%c0_20, %c0_21] : memref<1x64xf32, #tpu.memory_space<vmem>>, vector<1x64xf32>
    %25 = vector.broadcast %24 : vector<1x64xf32> to vector<128x64xf32>
    %26 = arith.addf %23, %25 : vector<128x64xf32>
    %cst_22 = arith.constant 0.000000e+00 : f32
    %27 = vector.broadcast %cst_22 : f32 to vector<128x64xf32>
    %28 = arith.maximumf %26, %27 : vector<128x64xf32>
    %c0_23 = arith.constant 0 : index
    %c0_24 = arith.constant 0 : index
    %29 = vector.load %arg10[%c0_23, %c0_24] : memref<64x32xf32, #tpu.memory_space<vmem>>, vector<64x32xf32>
    %cst_25 = arith.constant dense<0.000000e+00> : vector<128x32xf32>
    %30 = tpu.matmul %28, %29, %cst_25 {dimension_numbers = #tpu.dot_dimension_numbers<[1], [0], [0], [1], [0, 0, 1, 1], [], []>} : vector<128x64xf32>, vector<64x32xf32>, vector<128x32xf32> -> vector<128x32xf32>
    %c0_26 = arith.constant 0 : index
    %c0_27 = arith.constant 0 : index
    %31 = vector.load %arg11[%c0_26, %c0_27] : memref<1x32xf32, #tpu.memory_space<vmem>>, vector<1x32xf32>
    %32 = vector.broadcast %31 : vector<1x32xf32> to vector<128x32xf32>
    %33 = arith.addf %30, %32 : vector<128x32xf32>
    %cst_28 = arith.constant 0.000000e+00 : f32
    %34 = vector.broadcast %cst_28 : f32 to vector<128x32xf32>
    %35 = arith.maximumf %33, %34 : vector<128x32xf32>
    %c0_29 = arith.constant 0 : index
    %c0_30 = arith.constant 0 : index
    %36 = vector.load %arg12[%c0_29, %c0_30] : memref<32x10xf32, #tpu.memory_space<vmem>>, vector<32x10xf32>
    %cst_31 = arith.constant dense<0.000000e+00> : vector<128x10xf32>
    %37 = tpu.matmul %35, %36, %cst_31 {dimension_numbers = #tpu.dot_dimension_numbers<[1], [0], [0], [1], [0, 0, 1, 1], [], []>} : vector<128x32xf32>, vector<32x10xf32>, vector<128x10xf32> -> vector<128x10xf32>
    %c0_32 = arith.constant 0 : index
    %c0_33 = arith.constant 0 : index
    %38 = vector.load %arg13[%c0_32, %c0_33] : memref<1x10xf32, #tpu.memory_space<vmem>>, vector<1x10xf32>
    %39 = vector.broadcast %38 : vector<1x10xf32> to vector<128x10xf32>
    %40 = arith.addf %37, %39 : vector<128x10xf32>
    %41 = tpu.iota {dimensions = array<i32: 1>} : vector<128x10xi32>
    %c9_i32 = arith.constant 9 : i32
    %42 = vector.broadcast %c9_i32 : i32 to vector<128x10xi32>
    %43 = arith.cmpi slt, %41, %42 : vector<128x10xi32>
    %44 = math.tanh %40 : vector<128x10xf32>
    %cst_34 = arith.constant 0.000000e+00 : f32
    %45 = vector.broadcast %cst_34 : f32 to vector<128x10xf32>
    %46 = arith.maximumf %40, %45 : vector<128x10xf32>
    %47 = arith.select %43, %44, %46 : vector<128x10xi1>, vector<128x10xf32>
    %c0_35 = arith.constant 0 : index
    %c0_36 = arith.constant 0 : index
    %48 = vector.load %arg14[%c0_35, %c0_36] : memref<128x10xf32, #tpu.memory_space<vmem>>, vector<128x10xf32>
    tpu.vector_store %arg14[%c0_35, %c0_36], %47 {strides = array<i32>} : memref<128x10xf32, #tpu.memory_space<vmem>>, vector<128x10xf32>,
    return
  }
  func.func @transform_0(%arg0: i32) -> (i32, i32) {
    %c0_i32 = arith.constant 0 : i32
    %c0_i32_0 = arith.constant 0 : i32
    return %arg0, %c0_i32 : i32, i32
  }
  func.func @transform_1(%arg0: i32) -> (i32, i32) {
    %c0_i32 = arith.constant 0 : i32
    %c0_i32_0 = arith.constant 0 : i32
    return %arg0, %c0_i32 : i32, i32
  }
  func.func @transform_2(%arg0: i32) -> (i32, i32) {
    %c0_i32 = arith.constant 0 : i32
    %c0_i32_0 = arith.constant 0 : i32
    %c0_i32_1 = arith.constant 0 : i32
    return %c0_i32, %c0_i32_0 : i32, i32
  }
  func.func @transform_3(%arg0: i32) -> (i32, i32) {
    %c0_i32 = arith.constant 0 : i32
    %c0_i32_0 = arith.constant 0 : i32
    %c0_i32_1 = arith.constant 0 : i32
    return %c0_i32, %c0_i32_0 : i32, i32
  }
  func.func @transform_4(%arg0: i32) -> (i32, i32) {
    %c0_i32 = arith.constant 0 : i32
    %c0_i32_0 = arith.constant 0 : i32
    %c0_i32_1 = arith.constant 0 : i32
    return %c0_i32, %c0_i32_0 : i32, i32
  }
  func.func @transform_5(%arg0: i32) -> (i32, i32) {
    %c0_i32 = arith.constant 0 : i32
    %c0_i32_0 = arith.constant 0 : i32
    %c0_i32_1 = arith.constant 0 : i32
    return %c0_i32, %c0_i32_0 : i32, i32
  }
  func.func @transform_6(%arg0: i32) -> (i32, i32) {
    %c0_i32 = arith.constant 0 : i32
    %c0_i32_0 = arith.constant 0 : i32
    %c0_i32_1 = arith.constant 0 : i32
    return %c0_i32, %c0_i32_0 : i32, i32
  }
  func.func @transform_7(%arg0: i32) -> (i32, i32) {
    %c0_i32 = arith.constant 0 : i32
    %c0_i32_0 = arith.constant 0 : i32
    %c0_i32_1 = arith.constant 0 : i32
    return %c0_i32, %c0_i32_0 : i32, i32
  }
  func.func @transform_8(%arg0: i32) -> (i32, i32) {
    %c0_i32 = arith.constant 0 : i32
    %c0_i32_0 = arith.constant 0 : i32
    %c0_i32_1 = arith.constant 0 : i32
    return %c0_i32, %c0_i32_0 : i32, i32
  }
  func.func @transform_9(%arg0: i32) -> (i32, i32) {
    %c0_i32 = arith.constant 0 : i32
    %c0_i32_0 = arith.constant 0 : i32
    %c0_i32_1 = arith.constant 0 : i32
    return %c0_i32, %c0_i32_0 : i32, i32
  }
  func.func @transform_10(%arg0: i32) -> (i32, i32) {
    %c0_i32 = arith.constant 0 : i32
    %c0_i32_0 = arith.constant 0 : i32
    %c0_i32_1 = arith.constant 0 : i32
    return %c0_i32, %c0_i32_0 : i32, i32
  }
  func.func @transform_11(%arg0: i32) -> (i32, i32) {
    %c0_i32 = arith.constant 0 : i32
    %c0_i32_0 = arith.constant 0 : i32
    %c0_i32_1 = arith.constant 0 : i32
    return %c0_i32, %c0_i32_0 : i32, i32
  }
  func.func @transform_12(%arg0: i32) -> (i32, i32) {
    %c0_i32 = arith.constant 0 : i32
    %c0_i32_0 = arith.constant 0 : i32
    %c0_i32_1 = arith.constant 0 : i32
    return %c0_i32, %c0_i32_0 : i32, i32
  }
  func.func @transform_13(%arg0: i32) -> (i32, i32) {
    %c0_i32 = arith.constant 0 : i32
    %c0_i32_0 = arith.constant 0 : i32
    return %arg0, %c0_i32 : i32, i32
  }
}

</mosaic_0001>

<llo_original>
// kernel: yopo_forward.1
$region0: #{yopo_forward.1}
  #allocation0 [shape = 'u32[]', space=smem, size = 0x4, offset = 0x4, fixed_abs, tag = 'smem constant byte address 0x4 - core index']
  #allocation1 [shape = 'u32[144,128]{1,0:T(1,128)}', space=vmem, size = 0x12000, scoped, tag = 'internal scratch']
  %s0 = inlined_call_operand.vmem [shape: f32[128,49], index: 0, kind: input, shape index: {}]
  %s1 = inlined_call_operand.vmem [shape: f32[128,9], index: 1, kind: input, shape index: {}]
  %s2 = inlined_call_operand.vmem [shape: f32[49,144], index: 2, kind: input, shape index: {}]
  %s3 = inlined_call_operand.vmem [shape: f32[1,144], index: 3, kind: input, shape index: {}]
  %s4 = inlined_call_operand.vmem [shape: f32[144,32], index: 4, kind: input, shape index: {}]
  %s5 = inlined_call_operand.vmem [shape: f32[16,32], index: 5, kind: input, shape index: {}]
  %s6 = inlined_call_operand.vmem [shape: f32[9,64], index: 6, kind: input, shape index: {}]
  %s7 = inlined_call_operand.vmem [shape: f32[32,64], index: 7, kind: input, shape index: {}]
  %s8 = inlined_call_operand.vmem [shape: f32[1,64], index: 8, kind: input, shape index: {}]
  %s9 = inlined_call_operand.vmem [shape: f32[64,32], index: 9, kind: input, shape index: {}]
  %s10 = inlined_call_operand.vmem [shape: f32[1,32], index: 10, kind: input, shape index: {}]
  %s11 = inlined_call_operand.vmem [shape: f32[32,10], index: 11, kind: input, shape index: {}]
  %s12 = inlined_call_operand.vmem [shape: f32[1,10], index: 12, kind: input, shape index: {}]
  %s13 = inlined_call_operand.vmem [shape: f32[128,10], index: 13, kind: output, shape index: {}]
  %s14 = sld [smem:[#allocation0]]
  $region62: #{yopo_forward.1} parent=0
    _
  %s16 = ssub.s32 1, %s14
  %s17 = scalar_select 0, %s16, %s14
  // Predicated region
  $region2: #{yopo_forward.1} parent=0 // pred_check
    _
  $region3: #{yopo_forward.1} parent=0 // pred_check_branch
    %19 = sbr.rel (0) target = $region5
  $region4: #{yopo_forward.1} parent=0 // pred_region
    _
  $region5: #{yopo_forward.1} parent=0 // pred_fallthru
    _
  // Predicated region
  $region6: #{yopo_forward.1} parent=0 // pred_check
    _
  $region7: #{yopo_forward.1} parent=0 // pred_check_branch
    %21 = sbr.rel (0) target = $region9
  $region8: #{yopo_forward.1} parent=0 // pred_region
    _
  $region9: #{yopo_forward.1} parent=0 // pred_fallthru
    _
  // Predicated region
  $region10: #{yopo_forward.1} parent=0 // pred_check
    _
  $region11: #{yopo_forward.1} parent=0 // pred_check_branch
    %23 = sbr.rel (0) target = $region13
  $region12: #{yopo_forward.1} parent=0 // pred_region
    _
  $region13: #{yopo_forward.1} parent=0 // pred_fallthru
    _
  // Predicated region
  $region14: #{yopo_forward.1} parent=0 // pred_check
    _
  $region15: #{yopo_forward.1} parent=0 // pred_check_branch
    %25 = sbr.rel (0) target = $region17
  $region16: #{yopo_forward.1} parent=0 // pred_region
    _
  $region17: #{yopo_forward.1} parent=0 // pred_fallthru
    _
  // Predicated region
  $region18: #{yopo_forward.1} parent=0 // pred_check
    _
  $region19: #{yopo_forward.1} parent=0 // pred_check_branch
    %27 = sbr.rel (0) target = $region21
  $region20: #{yopo_forward.1} parent=0 // pred_region
    _
  $region21: #{yopo_forward.1} parent=0 // pred_fallthru
    _
  // Predicated region
  $region22: #{yopo_forward.1} parent=0 // pred_check
    _
  $region23: #{yopo_forward.1} parent=0 // pred_check_branch
    %29 = sbr.rel (0) target = $region25
  $region24: #{yopo_forward.1} parent=0 // pred_region
    _
  $region25: #{yopo_forward.1} parent=0 // pred_fallthru
    _
  // Predicated region
  $region26: #{yopo_forward.1} parent=0 // pred_check
    _
  $region27: #{yopo_forward.1} parent=0 // pred_check_branch
    %31 = sbr.rel (0) target = $region29
  $region28: #{yopo_forward.1} parent=0 // pred_region
    _
  $region29: #{yopo_forward.1} parent=0 // pred_fallthru
    _
  // Predicated region
  $region30: #{yopo_forward.1} parent=0 // pred_check
    _
  $region31: #{yopo_forward.1} parent=0 // pred_check_branch
    %33 = sbr.rel (0) target = $region33
  $region32: #{yopo_forward.1} parent=0 // pred_region
    _
  $region33: #{yopo_forward.1} parent=0 // pred_fallthru
    _
  // Predicated region
  $region34: #{yopo_forward.1} parent=0 // pred_check
    _
  $region35: #{yopo_forward.1} parent=0 // pred_check_branch
    %35 = sbr.rel (0) target = $region37
  $region36: #{yopo_forward.1} parent=0 // pred_region
    _
  $region37: #{yopo_forward.1} parent=0 // pred_fallthru
    _
  // Predicated region
  $region38: #{yopo_forward.1} parent=0 // pred_check
    _
  $region39: #{yopo_forward.1} parent=0 // pred_check_branch
    %37 = sbr.rel (0) target = $region41
  $region40: #{yopo_forward.1} parent=0 // pred_region
    _
  $region41: #{yopo_forward.1} parent=0 // pred_fallthru
    _
  // Predicated region
  $region42: #{yopo_forward.1} parent=0 // pred_check
    _
  $region43: #{yopo_forward.1} parent=0 // pred_check_branch
    %39 = sbr.rel (0) target = $region45
  $region44: #{yopo_forward.1} parent=0 // pred_region
    _
  $region45: #{yopo_forward.1} parent=0 // pred_fallthru
    _
  // Predicated region
  $region46: #{yopo_forward.1} parent=0 // pred_check
    _
  $region47: #{yopo_forward.1} parent=0 // pred_check_branch
    %41 = sbr.rel (0) target = $region49
  $region48: #{yopo_forward.1} parent=0 // pred_region
    _
  $region49: #{yopo_forward.1} parent=0 // pred_fallthru
    _
  // Predicated region
  $region50: #{yopo_forward.1} parent=0 // pred_check
    _
  $region51: #{yopo_forward.1} parent=0 // pred_check_branch
    %43 = sbr.rel (0) target = $region53
  $region52: #{yopo_forward.1} parent=0 // pred_region
    _
  $region53: #{yopo_forward.1} parent=0 // pred_fallthru
    _
  %v44 = vld [vmem:[%s0] sm:$0xff]
  %v45 = vld [vmem:[%s0 + $0x8] sm:$0xff]
  %v46 = vld [vmem:[%s0 + $0x10] sm:$0xff]
  %v47 = vld [vmem:[%s0 + $0x18] sm:$0xff]
  %v48 = vld [vmem:[%s0 + $0x20] sm:$0xff]
  %v49 = vld [vmem:[%s0 + $0x28] sm:$0xff]
  %v50 = vld [vmem:[%s0 + $0x30] sm:$0xff]
  %v51 = vld [vmem:[%s0 + $0x38] sm:$0xff]
  %v52 = vld [vmem:[%s0 + $0x40] sm:$0xff]
  %v53 = vld [vmem:[%s0 + $0x48] sm:$0xff]
  %v54 = vld [vmem:[%s0 + $0x50] sm:$0xff]
  %v55 = vld [vmem:[%s0 + $0x58] sm:$0xff]
  %v56 = vld [vmem:[%s0 + $0x60] sm:$0xff]
  %v57 = vld [vmem:[%s0 + $0x68] sm:$0xff]
  %v58 = vld [vmem:[%s0 + $0x70] sm:$0xff]
  %v59 = vld [vmem:[%s0 + $0x78] sm:$0xff]
  %v60 = vld [vmem:[%s2] sm:$0xff]
  %v61 = vld [vmem:[%s2 + $0x8] sm:$0xff]
  %v62 = vld [vmem:[%s2 + $0x10] sm:$0xff]
  %v63 = vld [vmem:[%s2 + $0x18] sm:$0xff]
  %v64 = vld [vmem:[%s2 + $0x20] sm:$0xff]
  %v65 = vld [vmem:[%s2 + $0x28] sm:$0xff]
  %v66 = vld [vmem:[%s2 + $0x30] sm:$0xff]
  %v67 = vld [vmem:[%s2 + $0x38] sm:$0xff]
  %v68 = vld [vmem:[%s2 + $0x40] sm:$0xff]
  %v69 = vld [vmem:[%s2 + $0x48] sm:$0xff]
  %v70 = vld [vmem:[%s2 + $0x50] sm:$0xff]
  %v71 = vld [vmem:[%s2 + $0x58] sm:$0xff]
  %v72 = vld [vmem:[%s2 + $0x60] sm:$0x1]
  %v73 = vld [vmem:[%s2 + $0x68] sm:$0x1]
  %v74 = vld [vmem:[%s3] sm:$0x3]
  %v76 = vlaneseq
  %v77 = vshrl.u32 %v76, 7
  %v78 = vsub.s32 0, %v77
  %v79 = vrot.slane %v74, %v78
  %v80 = vlaneseq
  %v81 = vshrl.u32 %v80, 7
  %v82 = vsub.s32 1, %v81
  %v83 = vrot.slane %v74, %v82
  %vm86 = vcmask 400384
  %v88 = vsel %vm86, %v44, 0
  %v91 = vsel %vm86, %v45, 0
  %v94 = vsel %vm86, %v46, 0
  %v97 = vsel %vm86, %v47, 0
  %v100 = vsel %vm86, %v48, 0
  %v103 = vsel %vm86, %v49, 0
  %v106 = vsel %vm86, %v50, 0
  %v109 = vsel %vm86, %v51, 0
  %v112 = vsel %vm86, %v52, 0
  %v115 = vsel %vm86, %v53, 0
  %v118 = vsel %vm86, %v54, 0
  %v121 = vsel %vm86, %v55, 0
  %v124 = vsel %vm86, %v56, 0
  %v127 = vsel %vm86, %v57, 0
  %v130 = vsel %vm86, %v58, 0
  %v133 = vsel %vm86, %v59, 0
  %vm135 = vcmask 1040384
  %v137 = vsel %vm135, %v72, 0
  %v140 = vsel %vm135, %v73, 0
  %142 = vmatprep.subr.mxu0 0.0
  %143 = vmatpush1.msra.mxu0 0.0
  %144 = vmatprep.subr.mxu0 0.0
  %145 = vmatpush1.msra.mxu0 0.0
  %146 = vmatprep.subr.mxu0 0.0
  %147 = vmatpush1.msra.mxu0 0.0
  %148 = vmatprep.subr.mxu0 0.0
  %149 = vmatpush1.msra.mxu0 0.0
  %150 = vmatprep.subr.mxu0 0.0
  %151 = vmatpush1.msra.mxu0 0.0
  %152 = vmatprep.subr.mxu0 0.0
  %153 = vmatpush1.msra.mxu0 0.0
  %154 = vmatprep.subr.mxu0 0.0
  %155 = vmatpush1.msra.mxu0 0.0
  %156 = vmatprep.subr.mxu0 0.0
  %157 = vmatpush1.msra.mxu0 0.0
  %158 = vmatprep.subr.mxu0 0.0
  %159 = vmatpush1.msra.mxu0 0.0
  %160 = vmatprep.subr.mxu0 %v140
  %161 = vmatpush1.msra.mxu0 %v137
  %162 = vmatprep.subr.mxu0 %v71
  %163 = vmatpush1.msra.mxu0 %v70
  %164 = vmatprep.subr.mxu0 %v69
  %165 = vmatpush1.msra.mxu0 %v68
  %166 = vmatprep.subr.mxu0 %v67
  %167 = vmatpush1.msra.mxu0 %v66
  %168 = vmatprep.subr.mxu0 %v65
  %169 = vmatpush1.msra.mxu0 %v64
  %170 = vmatprep.subr.mxu0 %v63
  %171 = vmatpush1.msra.mxu0 %v62
  %172 = vmatprep.subr.mxu0 %v61
  %173 = vmatpush1.msra.mxu0 %v60
  %174 = vmatprep.subr.mxu0 0.0
  %175 = vmatpush2.msra.mxu0 0.0
  %176 = vmatprep.subr.mxu0 0.0
  %177 = vmatpush2.msra.mxu0 0.0
  %178 = vmatprep.subr.mxu0 0.0
  %179 = vmatpush2.msra.mxu0 0.0
  %180 = vmatprep.subr.mxu0 0.0
  %181 = vmatpush2.msra.mxu0 0.0
  %182 = vmatprep.subr.mxu0 0.0
  %183 = vmatpush2.msra.mxu0 0.0
  %184 = vmatprep.subr.mxu0 0.0
  %185 = vmatpush2.msra.mxu0 0.0
  %186 = vmatprep.subr.mxu0 0.0
  %187 = vmatpush2.msra.mxu0 0.0
  %188 = vmatprep.subr.mxu0 0.0
  %189 = vmatpush2.msra.mxu0 0.0
  %190 = vmatprep.subr.mxu0 0.0
  %191 = vmatpush2.msra.mxu0 0.0
  %192 = vmatprep.subr.mxu0 0.0
  %193 = vmatpush2.msra.mxu0 0.0
  %194 = vmatprep.subr.mxu0 0.0
  %195 = vmatpush2.msra.mxu0 0.0
  %196 = vmatprep.subr.mxu0 0.0
  %197 = vmatpush2.msra.mxu0 0.0
  %198 = vmatprep.subr.mxu0 0.0
  %199 = vmatpush2.msra.mxu0 0.0
  %200 = vmatprep.subr.mxu0 0.0
  %201 = vmatpush2.msra.mxu0 0.0
  %202 = vmatprep.subr.mxu0 0.0
  %203 = vmatpush2.msra.mxu0 0.0
  %204 = vmatprep.subr.mxu0 0.0
  %205 = vmatpush2.msra.mxu0 0.0
  %206 = vmatprep.mubr.f32.mxu0 0.0
  %207 = vmatmul.mubr.f32.gmra.mxu0 %v88
  %v208 = vpop.f32.mrf.mxu0
  %v209 = vadd.f32 %v79, %v208
  %v210 = vpop.f32.mrf.mxu0
  %v211 = vadd.f32 %v83, %v210
  %212 = vmatprep.mubr.f32.mxu0 0.0
  %213 = vmatmul.mubr.f32.gmra.mxu0 %v91
  %v214 = vpop.f32.mrf.mxu0
  %v215 = vadd.f32 %v79, %v214
  %v216 = vpop.f32.mrf.mxu0
  %v217 = vadd.f32 %v83, %v216
  %218 = vmatprep.mubr.f32.mxu0 0.0
  %219 = vmatmul.mubr.f32.gmra.mxu0 %v94
  %v220 = vpop.f32.mrf.mxu0
  %v221 = vadd.f32 %v79, %v220
  %v222 = vpop.f32.mrf.mxu0
  %v223 = vadd.f32 %v83, %v222
  %224 = vmatprep.mubr.f32.mxu0 0.0
  %225 = vmatmul.mubr.f32.gmra.mxu0 %v97
  %v226 = vpop.f32.mrf.mxu0
  %v227 = vadd.f32 %v79, %v226
  %v228 = vpop.f32.mrf.mxu0
  %v229 = vadd.f32 %v83, %v228
  %230 = vmatprep.mubr.f32.mxu0 0.0
  %231 = vmatmul.mubr.f32.gmra.mxu0 %v100
  %v232 = vpop.f32.mrf.mxu0
  %v233 = vadd.f32 %v79, %v232
  %v234 = vpop.f32.mrf.mxu0
  %v235 = vadd.f32 %v83, %v234
  %236 = vmatprep.mubr.f32.mxu0 0.0
  %237 = vmatmul.mubr.f32.gmra.mxu0 %v103
  %v238 = vpop.f32.mrf.mxu0
  %v239 = vadd.f32 %v79, %v238
  %v240 = vpop.f32.mrf.mxu0
  %v241 = vadd.f32 %v83, %v240
  %242 = vmatprep.mubr.f32.mxu0 0.0
  %243 = vmatmul.mubr.f32.gmra.mxu0 %v106
  %v244 = vpop.f32.mrf.mxu0
  %v245 = vadd.f32 %v79, %v244
  %v246 = vpop.f32.mrf.mxu0
  %v247 = vadd.f32 %v83, %v246
  %248 = vmatprep.mubr.f32.mxu0 0.0
  %249 = vmatmul.mubr.f32.gmra.mxu0 %v109
  %v250 = vpop.f32.mrf.mxu0
  %v251 = vadd.f32 %v79, %v250
  %v252 = vpop.f32.mrf.mxu0
  %v253 = vadd.f32 %v83, %v252
  %254 = vmatprep.mubr.f32.mxu0 0.0
  %255 = vmatmul.mubr.f32.gmra.mxu0 %v112
  %v256 = vpop.f32.mrf.mxu0
  %v257 = vadd.f32 %v79, %v256
  %v258 = vpop.f32.mrf.mxu0
  %v259 = vadd.f32 %v83, %v258
  %260 = vmatprep.mubr.f32.mxu0 0.0
  %261 = vmatmul.mubr.f32.gmra.mxu0 %v115
  %v262 = vpop.f32.mrf.mxu0
  %v263 = vadd.f32 %v79, %v262
  %v264 = vpop.f32.mrf.mxu0
  %v265 = vadd.f32 %v83, %v264
  %266 = vmatprep.mubr.f32.mxu0 0.0
  %267 = vmatmul.mubr.f32.gmra.mxu0 %v118
  %v268 = vpop.f32.mrf.mxu0
  %v269 = vadd.f32 %v79, %v268
  %v270 = vpop.f32.mrf.mxu0
  %v271 = vadd.f32 %v83, %v270
  %272 = vmatprep.mubr.f32.mxu0 0.0
  %273 = vmatmul.mubr.f32.gmra.mxu0 %v121
  %v274 = vpop.f32.mrf.mxu0
  %v275 = vadd.f32 %v79, %v274
  %v276 = vpop.f32.mrf.mxu0
  %v277 = vadd.f32 %v83, %v276
  %278 = vmatprep.mubr.f32.mxu0 0.0
  %279 = vmatmul.mubr.f32.gmra.mxu0 %v124
  %v280 = vpop.f32.mrf.mxu0
  %v281 = vadd.f32 %v79, %v280
  %v282 = vpop.f32.mrf.mxu0
  %v283 = vadd.f32 %v83, %v282
  %284 = vmatprep.mubr.f32.mxu0 0.0
  %285 = vmatmul.mubr.f32.gmra.mxu0 %v127
  %v286 = vpop.f32.mrf.mxu0
  %v287 = vadd.f32 %v79, %v286
  %v288 = vpop.f32.mrf.mxu0
  %v289 = vadd.f32 %v83, %v288
  %290 = vmatprep.mubr.f32.mxu0 0.0
  %291 = vmatmul.mubr.f32.gmra.mxu0 %v130
  %v292 = vpop.f32.mrf.mxu0
  %v293 = vadd.f32 %v79, %v292
  %v294 = vpop.f32.mrf.mxu0
  %v295 = vadd.f32 %v83, %v294
  %296 = vmatprep.mubr.f32.mxu0 0.0
  %297 = vmatmul.mubr.f32.gmra.mxu0 %v133
  %v298 = vpop.f32.mrf.mxu0
  %v299 = vadd.f32 %v79, %v298
  %v300 = vpop.f32.mrf.mxu0
  %v301 = vadd.f32 %v83, %v300
  %302 = vdwg.mxu0
  %v303 = vmax.f32 %v209, 0.0
  %v304 = vmax.f32 %v211, 0.0
  %v305 = vmax.f32 %v215, 0.0
  %v306 = vmax.f32 %v217, 0.0
  %v307 = vmax.f32 %v221, 0.0
  %v308 = vmax.f32 %v223, 0.0
  %v309 = vmax.f32 %v227, 0.0
  %v310 = vmax.f32 %v229, 0.0
  %v311 = vmax.f32 %v233, 0.0
  %v312 = vmax.f32 %v235, 0.0
  %v313 = vmax.f32 %v239, 0.0
  %v314 = vmax.f32 %v241, 0.0
  %v315 = vmax.f32 %v245, 0.0
  %v316 = vmax.f32 %v247, 0.0
  %v317 = vmax.f32 %v251, 0.0
  %v318 = vmax.f32 %v253, 0.0
  %v319 = vmax.f32 %v257, 0.0
  %v320 = vmax.f32 %v259, 0.0
  %v321 = vmax.f32 %v263, 0.0
  %v322 = vmax.f32 %v265, 0.0
  %v323 = vmax.f32 %v269, 0.0
  %v324 = vmax.f32 %v271, 0.0
  %v325 = vmax.f32 %v275, 0.0
  %v326 = vmax.f32 %v277, 0.0
  %v327 = vmax.f32 %v281, 0.0
  %v328 = vmax.f32 %v283, 0.0
  %v329 = vmax.f32 %v287, 0.0
  %v330 = vmax.f32 %v289, 0.0
  %v331 = vmax.f32 %v293, 0.0
  %v332 = vmax.f32 %v295, 0.0
  %v333 = vmax.f32 %v299, 0.0
  %v334 = vmax.f32 %v301, 0.0
  %v335 = vld [vmem:[%s4] sm:$0xff]
  %v336 = vld [vmem:[%s4 + $0x8] sm:$0xff]
  %v337 = vld [vmem:[%s4 + $0x10] sm:$0xff]
  %v338 = vld [vmem:[%s4 + $0x18] sm:$0xff]
  %v339 = vld [vmem:[%s4 + $0x20] sm:$0xff]
  %v340 = vld [vmem:[%s4 + $0x28] sm:$0xff]
  %v341 = vld [vmem:[%s4 + $0x30] sm:$0xff]
  %v342 = vld [vmem:[%s4 + $0x38] sm:$0xff]
  %v343 = vld [vmem:[%s4 + $0x40] sm:$0xff]
  %v344 = vld [vmem:[%s4 + $0x48] sm:$0xff]
  %v345 = vld [vmem:[%s4 + $0x50] sm:$0xff]
  %v346 = vld [vmem:[%s4 + $0x58] sm:$0xff]
  %v347 = vld [vmem:[%s4 + $0x60] sm:$0xff]
  %v348 = vld [vmem:[%s4 + $0x68] sm:$0xff]
  %v349 = vld [vmem:[%s4 + $0x70] sm:$0xff]
  %v350 = vld [vmem:[%s4 + $0x78] sm:$0xff]
  %v351 = vld [vmem:[%s4 + $0x80] sm:$0xff]
  %v352 = vld [vmem:[%s4 + $0x88] sm:$0xff]
  %vm353 = vcmask 130048
  %v355 = vsel %vm353, %v304, 0
  %v358 = vsel %vm353, %v306, 0
  %v361 = vsel %vm353, %v308, 0
  %v364 = vsel %vm353, %v310, 0
  %v367 = vsel %vm353, %v312, 0
  %v370 = vsel %vm353, %v314, 0
  %v373 = vsel %vm353, %v316, 0
  %v376 = vsel %vm353, %v318, 0
  %v379 = vsel %vm353, %v320, 0
  %v382 = vsel %vm353, %v322, 0
  %v385 = vsel %vm353, %v324, 0
  %v388 = vsel %vm353, %v326, 0
  %v391 = vsel %vm353, %v328, 0
  %v394 = vsel %vm353, %v330, 0
  %v397 = vsel %vm353, %v332, 0
  %v400 = vsel %vm353, %v334, 0
  %402 = vmatprep.subr.mxu0 0.0
  %403 = vmatpush1.msra.mxu0 %v350
  %404 = vmatprep.subr.mxu0 0.0
  %405 = vmatpush1.msra.mxu0 %v349
  %406 = vmatprep.subr.mxu0 0.0
  %407 = vmatpush1.msra.mxu0 %v348
  %408 = vmatprep.subr.mxu0 0.0
  %409 = vmatpush1.msra.mxu0 %v347
  %410 = vmatprep.subr.mxu0 0.0
  %411 = vmatpush1.msra.mxu0 %v346
  %412 = vmatprep.subr.mxu0 0.0
  %413 = vmatpush1.msra.mxu0 %v345
  %414 = vmatprep.subr.mxu0 0.0
  %415 = vmatpush1.msra.mxu0 %v344
  %416 = vmatprep.subr.mxu0 0.0
  %417 = vmatpush1.msra.mxu0 %v343
  %418 = vmatprep.subr.mxu0 0.0
  %419 = vmatpush1.msra.mxu0 %v342
  %420 = vmatprep.subr.mxu0 0.0
  %421 = vmatpush1.msra.mxu0 %v341
  %422 = vmatprep.subr.mxu0 0.0
  %423 = vmatpush1.msra.mxu0 %v340
  %424 = vmatprep.subr.mxu0 0.0
  %425 = vmatpush1.msra.mxu0 %v339
  %426 = vmatprep.subr.mxu0 0.0
  %427 = vmatpush1.msra.mxu0 %v338
  %428 = vmatprep.subr.mxu0 0.0
  %429 = vmatpush1.msra.mxu0 %v337
  %430 = vmatprep.subr.mxu0 0.0
  %431 = vmatpush1.msra.mxu0 %v336
  %432 = vmatprep.subr.mxu0 0.0
  %433 = vmatpush1.msra.mxu0 %v335
  %434 = vmatprep.subr.mxu0 0.0
  %435 = vmatpush2.msra.mxu0 0.0
  %436 = vmatprep.subr.mxu0 0.0
  %437 = vmatpush2.msra.mxu0 0.0
  %438 = vmatprep.subr.mxu0 0.0
  %439 = vmatpush2.msra.mxu0 0.0
  %440 = vmatprep.subr.mxu0 0.0
  %441 = vmatpush2.msra.mxu0 0.0
  %442 = vmatprep.subr.mxu0 0.0
  %443 = vmatpush2.msra.mxu0 0.0
  %444 = vmatprep.subr.mxu0 0.0
  %445 = vmatpush2.msra.mxu0 0.0
  %446 = vmatprep.subr.mxu0 0.0
  %447 = vmatpush2.msra.mxu0 0.0
  %448 = vmatprep.subr.mxu0 0.0
  %449 = vmatpush2.msra.mxu0 0.0
  %450 = vmatprep.subr.mxu0 0.0
  %451 = vmatpush2.msra.mxu0 0.0
  %452 = vmatprep.subr.mxu0 0.0
  %453 = vmatpush2.msra.mxu0 0.0
  %454 = vmatprep.subr.mxu0 0.0
  %455 = vmatpush2.msra.mxu0 0.0
  %456 = vmatprep.subr.mxu0 0.0
  %457 = vmatpush2.msra.mxu0 0.0
  %458 = vmatprep.subr.mxu0 0.0
  %459 = vmatpush2.msra.mxu0 0.0
  %460 = vmatprep.subr.mxu0 0.0
  %461 = vmatpush2.msra.mxu0 0.0
  %462 = vmatprep.subr.mxu0 0.0
  %463 = vmatpush2.msra.mxu0 %v352
  %464 = vmatprep.subr.mxu0 0.0
  %465 = vmatpush2.msra.mxu0 %v351
  %466 = vmatprep.mubr.f32.mxu0 %v355
  %467 = vmatmul.mubr.f32.gmra.mxu0 %v303
  %v468 = vpop.f32.mrf.mxu0
  %v469 = vadd.f32 0.0, %v468
  %v470 = vpop.f32.mrf.mxu0
  %471 = vmatprep.mubr.f32.mxu0 %v358
  %472 = vmatmul.mubr.f32.gmra.mxu0 %v305
  %v473 = vpop.f32.mrf.mxu0
  %v474 = vadd.f32 0.0, %v473
  %v475 = vpop.f32.mrf.mxu0
  %476 = vmatprep.mubr.f32.mxu0 %v361
  %477 = vmatmul.mubr.f32.gmra.mxu0 %v307
  %v478 = vpop.f32.mrf.mxu0
  %v479 = vadd.f32 0.0, %v478
  %v480 = vpop.f32.mrf.mxu0
  %481 = vmatprep.mubr.f32.mxu0 %v364
  %482 = vmatmul.mubr.f32.gmra.mxu0 %v309
  %v483 = vpop.f32.mrf.mxu0
  %v484 = vadd.f32 0.0, %v483
  %v485 = vpop.f32.mrf.mxu0
  %486 = vmatprep.mubr.f32.mxu0 %v367
  %487 = vmatmul.mubr.f32.gmra.mxu0 %v311
  %v488 = vpop.f32.mrf.mxu0
  %v489 = vadd.f32 0.0, %v488
  %v490 = vpop.f32.mrf.mxu0
  %491 = vmatprep.mubr.f32.mxu0 %v370
  %492 = vmatmul.mubr.f32.gmra.mxu0 %v313
  %v493 = vpop.f32.mrf.mxu0
  %v494 = vadd.f32 0.0, %v493
  %v495 = vpop.f32.mrf.mxu0
  %496 = vmatprep.mubr.f32.mxu0 %v373
  %497 = vmatmul.mubr.f32.gmra.mxu0 %v315
  %v498 = vpop.f32.mrf.mxu0
  %v499 = vadd.f32 0.0, %v498
  %v500 = vpop.f32.mrf.mxu0
  %501 = vmatprep.mubr.f32.mxu0 %v376
  %502 = vmatmul.mubr.f32.gmra.mxu0 %v317
  %v503 = vpop.f32.mrf.mxu0
  %v504 = vadd.f32 0.0, %v503
  %v505 = vpop.f32.mrf.mxu0
  %506 = vmatprep.mubr.f32.mxu0 %v379
  %507 = vmatmul.mubr.f32.gmra.mxu0 %v319
  %v508 = vpop.f32.mrf.mxu0
  %v509 = vadd.f32 0.0, %v508
  %v510 = vpop.f32.mrf.mxu0
  %511 = vmatprep.mubr.f32.mxu0 %v382
  %512 = vmatmul.mubr.f32.gmra.mxu0 %v321
  %v513 = vpop.f32.mrf.mxu0
  %v514 = vadd.f32 0.0, %v513
  %v515 = vpop.f32.mrf.mxu0
  %516 = vmatprep.mubr.f32.mxu0 %v385
  %517 = vmatmul.mubr.f32.gmra.mxu0 %v323
  %v518 = vpop.f32.mrf.mxu0
  %v519 = vadd.f32 0.0, %v518
  %v520 = vpop.f32.mrf.mxu0
  %521 = vmatprep.mubr.f32.mxu0 %v388
  %522 = vmatmul.mubr.f32.gmra.mxu0 %v325
  %v523 = vpop.f32.mrf.mxu0
  %v524 = vadd.f32 0.0, %v523
  %v525 = vpop.f32.mrf.mxu0
  %526 = vmatprep.mubr.f32.mxu0 %v391
  %527 = vmatmul.mubr.f32.gmra.mxu0 %v327
  %v528 = vpop.f32.mrf.mxu0
  %v529 = vadd.f32 0.0, %v528
  %v530 = vpop.f32.mrf.mxu0
  %531 = vmatprep.mubr.f32.mxu0 %v394
  %532 = vmatmul.mubr.f32.gmra.mxu0 %v329
  %v533 = vpop.f32.mrf.mxu0
  %v534 = vadd.f32 0.0, %v533
  %v535 = vpop.f32.mrf.mxu0
  %536 = vmatprep.mubr.f32.mxu0 %v397
  %537 = vmatmul.mubr.f32.gmra.mxu0 %v331
  %v538 = vpop.f32.mrf.mxu0
  %v539 = vadd.f32 0.0, %v538
  %v540 = vpop.f32.mrf.mxu0
  %541 = vmatprep.mubr.f32.mxu0 %v400
  %542 = vmatmul.mubr.f32.gmra.mxu0 %v333
  %v543 = vpop.f32.mrf.mxu0
  %v544 = vadd.f32 0.0, %v543
  %v545 = vpop.f32.mrf.mxu0
  %546 = vdwg.mxu0
  %v547 = vld [vmem:[%s5] sm:$0xff]
  %v548 = vld [vmem:[%s5 + $0x8] sm:$0xff]
  %v549 = vadd.f32 %v469, %v547
  %v550 = vadd.f32 %v474, %v548
  %v551 = vadd.f32 %v479, %v547
  %v552 = vadd.f32 %v484, %v548
  %v553 = vadd.f32 %v489, %v547
  %v554 = vadd.f32 %v494, %v548
  %v555 = vadd.f32 %v499, %v547
  %v556 = vadd.f32 %v504, %v548
  %v557 = vadd.f32 %v509, %v547
  %v558 = vadd.f32 %v514, %v548
  %v559 = vadd.f32 %v519, %v547
  %v560 = vadd.f32 %v524, %v548
  %v561 = vadd.f32 %v529, %v547
  %v562 = vadd.f32 %v534, %v548
  %v563 = vadd.f32 %v539, %v547
  %v564 = vadd.f32 %v544, %v548
  %v565 = vmax.f32 %v549, 0.0
  %v566 = vmax.f32 %v550, 0.0
  %v567 = vmax.f32 %v551, 0.0
  %v568 = vmax.f32 %v552, 0.0
  %v569 = vmax.f32 %v553, 0.0
  %v570 = vmax.f32 %v554, 0.0
  %v571 = vmax.f32 %v555, 0.0
  %v572 = vmax.f32 %v556, 0.0
  %v573 = vmax.f32 %v557, 0.0
  %v574 = vmax.f32 %v558, 0.0
  %v575 = vmax.f32 %v559, 0.0
  %v576 = vmax.f32 %v560, 0.0
  %v577 = vmax.f32 %v561, 0.0
  %v578 = vmax.f32 %v562, 0.0
  %v579 = vmax.f32 %v563, 0.0
  %v580 = vmax.f32 %v564, 0.0
  %v581 = vld [vmem:[%s1] sm:$0xff]
  %v582 = vld [vmem:[%s1 + $0x8] sm:$0xff]
  %v583 = vld [vmem:[%s1 + $0x10] sm:$0xff]
  %v584 = vld [vmem:[%s1 + $0x18] sm:$0xff]
  %v585 = vld [vmem:[%s1 + $0x20] sm:$0xff]
  %v586 = vld [vmem:[%s1 + $0x28] sm:$0xff]
  %v587 = vld [vmem:[%s1 + $0x30] sm:$0xff]
  %v588 = vld [vmem:[%s1 + $0x38] sm:$0xff]
  %v589 = vld [vmem:[%s1 + $0x40] sm:$0xff]
  %v590 = vld [vmem:[%s1 + $0x48] sm:$0xff]
  %v591 = vld [vmem:[%s1 + $0x50] sm:$0xff]
  %v592 = vld [vmem:[%s1 + $0x58] sm:$0xff]
  %v593 = vld [vmem:[%s1 + $0x60] sm:$0xff]
  %v594 = vld [vmem:[%s1 + $0x68] sm:$0xff]
  %v595 = vld [vmem:[%s1 + $0x70] sm:$0xff]
  %v596 = vld [vmem:[%s1 + $0x78] sm:$0xff]
  %v597 = vld [vmem:[%s6] sm:$0xff]
  %v598 = vld [vmem:[%s6 + $0x8] sm:$0x1]
  %v599 = vld [vmem:[%s7] sm:$0xff]
  %v600 = vld [vmem:[%s7 + $0x8] sm:$0xff]
  %v601 = vld [vmem:[%s7 + $0x10] sm:$0xff]
  %v602 = vld [vmem:[%s7 + $0x18] sm:$0xff]
  %vm603 = vcmask 261120
  %v605 = vsel %vm603, %v565, 0
  %v608 = vsel %vm603, %v566, 0
  %v611 = vsel %vm603, %v567, 0
  %v614 = vsel %vm603, %v568, 0
  %v617 = vsel %vm603, %v569, 0
  %v620 = vsel %vm603, %v570, 0
  %v623 = vsel %vm603, %v571, 0
  %v626 = vsel %vm603, %v572, 0
  %v629 = vsel %vm603, %v573, 0
  %v632 = vsel %vm603, %v574, 0
  %v635 = vsel %vm603, %v575, 0
  %v638 = vsel %vm603, %v576, 0
  %v641 = vsel %vm603, %v577, 0
  %v644 = vsel %vm603, %v578, 0
  %v647 = vsel %vm603, %v579, 0
  %v650 = vsel %vm603, %v580, 0
  %652 = vmatprep.subr.mxu0 0.0
  %653 = vmatpush1.msra.mxu0 0.0
  %654 = vmatprep.subr.mxu0 0.0
  %655 = vmatpush1.msra.mxu0 0.0
  %656 = vmatprep.subr.mxu0 0.0
  %657 = vmatpush1.msra.mxu0 0.0
  %658 = vmatprep.subr.mxu0 0.0
  %659 = vmatpush1.msra.mxu0 0.0
  %660 = vmatprep.subr.mxu0 0.0
  %661 = vmatpush1.msra.mxu0 0.0
  %662 = vmatprep.subr.mxu0 0.0
  %663 = vmatpush1.msra.mxu0 0.0
  %664 = vmatprep.subr.mxu0 0.0
  %665 = vmatpush1.msra.mxu0 0.0
  %666 = vmatprep.subr.mxu0 0.0
  %667 = vmatpush1.msra.mxu0 0.0
  %668 = vmatprep.subr.mxu0 0.0
  %669 = vmatpush1.msra.mxu0 0.0
  %670 = vmatprep.subr.mxu0 0.0
  %671 = vmatpush1.msra.mxu0 0.0
  %672 = vmatprep.subr.mxu0 0.0
  %673 = vmatpush1.msra.mxu0 0.0
  %674 = vmatprep.subr.mxu0 0.0
  %675 = vmatpush1.msra.mxu0 0.0
  %676 = vmatprep.subr.mxu0 0.0
  %677 = vmatpush1.msra.mxu0 %v602
  %678 = vmatprep.subr.mxu0 0.0
  %679 = vmatpush1.msra.mxu0 %v601
  %680 = vmatprep.subr.mxu0 0.0
  %681 = vmatpush1.msra.mxu0 %v600
  %682 = vmatprep.subr.mxu0 0.0
  %683 = vmatpush1.msra.mxu0 %v599
  %684 = vmatprep.subr.mxu0 0.0
  %685 = vmatpush2.msra.mxu0 0.0
  %686 = vmatprep.subr.mxu0 0.0
  %687 = vmatpush2.msra.mxu0 0.0
  %688 = vmatprep.subr.mxu0 0.0
  %689 = vmatpush2.msra.mxu0 0.0
  %690 = vmatprep.subr.mxu0 0.0
  %691 = vmatpush2.msra.mxu0 0.0
  %692 = vmatprep.subr.mxu0 0.0
  %693 = vmatpush2.msra.mxu0 0.0
  %694 = vmatprep.subr.mxu0 0.0
  %695 = vmatpush2.msra.mxu0 0.0
  %696 = vmatprep.subr.mxu0 0.0
  %697 = vmatpush2.msra.mxu0 0.0
  %698 = vmatprep.subr.mxu0 0.0
  %699 = vmatpush2.msra.mxu0 0.0
  %700 = vmatprep.subr.mxu0 0.0
  %701 = vmatpush2.msra.mxu0 0.0
  %702 = vmatprep.subr.mxu0 0.0
  %703 = vmatpush2.msra.mxu0 0.0
  %704 = vmatprep.subr.mxu0 0.0
  %705 = vmatpush2.msra.mxu0 0.0
  %706 = vmatprep.subr.mxu0 0.0
  %707 = vmatpush2.msra.mxu0 0.0
  %708 = vmatprep.subr.mxu0 0.0
  %709 = vmatpush2.msra.mxu0 0.0
  %710 = vmatprep.subr.mxu0 0.0
  %711 = vmatpush2.msra.mxu0 0.0
  %712 = vmatprep.subr.mxu0 0.0
  %713 = vmatpush2.msra.mxu0 0.0
  %714 = vmatprep.subr.mxu0 0.0
  %715 = vmatpush2.msra.mxu0 0.0
  %716 = vmatprep.mubr.f32.mxu0 0.0
  %717 = vmatmul.mubr.f32.gmra.mxu0 %v605
  %v718 = vpop.f32.mrf.mxu0
  %v719 = vadd.f32 0.0, %v718
  %v720 = vpop.f32.mrf.mxu0
  %721 = vmatprep.mubr.f32.mxu0 0.0
  %722 = vmatmul.mubr.f32.gmra.mxu0 %v608
  %v723 = vpop.f32.mrf.mxu0
  %v724 = vadd.f32 0.0, %v723
  %v725 = vpop.f32.mrf.mxu0
  %726 = vmatprep.mubr.f32.mxu0 0.0
  %727 = vmatmul.mubr.f32.gmra.mxu0 %v611
  %v728 = vpop.f32.mrf.mxu0
  %v729 = vadd.f32 0.0, %v728
  %v730 = vpop.f32.mrf.mxu0
  %731 = vmatprep.mubr.f32.mxu0 0.0
  %732 = vmatmul.mubr.f32.gmra.mxu0 %v614
  %v733 = vpop.f32.mrf.mxu0
  %v734 = vadd.f32 0.0, %v733
  %v735 = vpop.f32.mrf.mxu0
  %736 = vmatprep.mubr.f32.mxu0 0.0
  %737 = vmatmul.mubr.f32.gmra.mxu0 %v617
  %v738 = vpop.f32.mrf.mxu0
  %v739 = vadd.f32 0.0, %v738
  %v740 = vpop.f32.mrf.mxu0
  %741 = vmatprep.mubr.f32.mxu0 0.0
  %742 = vmatmul.mubr.f32.gmra.mxu0 %v620
  %v743 = vpop.f32.mrf.mxu0
  %v744 = vadd.f32 0.0, %v743
  %v745 = vpop.f32.mrf.mxu0
  %746 = vmatprep.mubr.f32.mxu0 0.0
  %747 = vmatmul.mubr.f32.gmra.mxu0 %v623
  %v748 = vpop.f32.mrf.mxu0
  %v749 = vadd.f32 0.0, %v748
  %v750 = vpop.f32.mrf.mxu0
  %751 = vmatprep.mubr.f32.mxu0 0.0
  %752 = vmatmul.mubr.f32.gmra.mxu0 %v626
  %v753 = vpop.f32.mrf.mxu0
  %v754 = vadd.f32 0.0, %v753
  %v755 = vpop.f32.mrf.mxu0
  %756 = vmatprep.mubr.f32.mxu0 0.0
  %757 = vmatmul.mubr.f32.gmra.mxu0 %v629
  %v758 = vpop.f32.mrf.mxu0
  %v759 = vadd.f32 0.0, %v758
  %v760 = vpop.f32.mrf.mxu0
  %761 = vmatprep.mubr.f32.mxu0 0.0
  %762 = vmatmul.mubr.f32.gmra.mxu0 %v632
  %v763 = vpop.f32.mrf.mxu0
  %v764 = vadd.f32 0.0, %v763
  %v765 = vpop.f32.mrf.mxu0
  %766 = vmatprep.mubr.f32.mxu0 0.0
  %767 = vmatmul.mubr.f32.gmra.mxu0 %v635
  %v768 = vpop.f32.mrf.mxu0
  %v769 = vadd.f32 0.0, %v768
  %v770 = vpop.f32.mrf.mxu0
  %771 = vmatprep.mubr.f32.mxu0 0.0
  %772 = vmatmul.mubr.f32.gmra.mxu0 %v638
  %v773 = vpop.f32.mrf.mxu0
  %v774 = vadd.f32 0.0, %v773
  %v775 = vpop.f32.mrf.mxu0
  %776 = vmatprep.mubr.f32.mxu0 0.0
  %777 = vmatmul.mubr.f32.gmra.mxu0 %v641
  %v778 = vpop.f32.mrf.mxu0
  %v779 = vadd.f32 0.0, %v778
  %v780 = vpop.f32.mrf.mxu0
  %781 = vmatprep.mubr.f32.mxu0 0.0
  %782 = vmatmul.mubr.f32.gmra.mxu0 %v644
  %v783 = vpop.f32.mrf.mxu0
  %v784 = vadd.f32 0.0, %v783
  %v785 = vpop.f32.mrf.mxu0
  %786 = vmatprep.mubr.f32.mxu0 0.0
  %787 = vmatmul.mubr.f32.gmra.mxu0 %v647
  %v788 = vpop.f32.mrf.mxu0
  %v789 = vadd.f32 0.0, %v788
  %v790 = vpop.f32.mrf.mxu0
  %791 = vmatprep.mubr.f32.mxu0 0.0
  %792 = vmatmul.mubr.f32.gmra.mxu0 %v650
  %v793 = vpop.f32.mrf.mxu0
  %v794 = vadd.f32 0.0, %v793
  %v795 = vpop.f32.mrf.mxu0
  %796 = vdwg.mxu0
  %vm797 = vcmask 72704
  %v799 = vsel %vm797, %v581, 0
  %v802 = vsel %vm797, %v582, 0
  %v805 = vsel %vm797, %v583, 0
  %v808 = vsel %vm797, %v584, 0
  %v811 = vsel %vm797, %v585, 0
  %v814 = vsel %vm797, %v586, 0
  %v817 = vsel %vm797, %v587, 0
  %v820 = vsel %vm797, %v588, 0
  %v823 = vsel %vm797, %v589, 0
  %v826 = vsel %vm797, %v590, 0
  %v829 = vsel %vm797, %v591, 0
  %v832 = vsel %vm797, %v592, 0
  %v835 = vsel %vm797, %v593, 0
  %v838 = vsel %vm797, %v594, 0
  %v841 = vsel %vm797, %v595, 0
  %v844 = vsel %vm797, %v596, 0
  %v847 = vsel %vm135, %v598, 0
  %849 = vmatprep.subr.mxu0 0.0
  %850 = vmatpush1.msra.mxu0 0.0
  %851 = vmatprep.subr.mxu0 0.0
  %852 = vmatpush1.msra.mxu0 0.0
  %853 = vmatprep.subr.mxu0 0.0
  %854 = vmatpush1.msra.mxu0 0.0
  %855 = vmatprep.subr.mxu0 0.0
  %856 = vmatpush1.msra.mxu0 0.0
  %857 = vmatprep.subr.mxu0 0.0
  %858 = vmatpush1.msra.mxu0 0.0
  %859 = vmatprep.subr.mxu0 0.0
  %860 = vmatpush1.msra.mxu0 0.0
  %861 = vmatprep.subr.mxu0 0.0
  %862 = vmatpush1.msra.mxu0 0.0
  %863 = vmatprep.subr.mxu0 0.0
  %864 = vmatpush1.msra.mxu0 0.0
  %865 = vmatprep.subr.mxu0 0.0
  %866 = vmatpush1.msra.mxu0 0.0
  %867 = vmatprep.subr.mxu0 0.0
  %868 = vmatpush1.msra.mxu0 0.0
  %869 = vmatprep.subr.mxu0 0.0
  %870 = vmatpush1.msra.mxu0 0.0
  %871 = vmatprep.subr.mxu0 0.0
  %872 = vmatpush1.msra.mxu0 0.0
  %873 = vmatprep.subr.mxu0 0.0
  %874 = vmatpush1.msra.mxu0 0.0
  %875 = vmatprep.subr.mxu0 0.0
  %876 = vmatpush1.msra.mxu0 0.0
  %877 = vmatprep.subr.mxu0 0.0
  %878 = vmatpush1.msra.mxu0 %v847
  %879 = vmatprep.subr.mxu0 0.0
  %880 = vmatpush1.msra.mxu0 %v597
  %881 = vmatprep.subr.mxu0 0.0
  %882 = vmatpush2.msra.mxu0 0.0
  %883 = vmatprep.subr.mxu0 0.0
  %884 = vmatpush2.msra.mxu0 0.0
  %885 = vmatprep.subr.mxu0 0.0
  %886 = vmatpush2.msra.mxu0 0.0
  %887 = vmatprep.subr.mxu0 0.0
  %888 = vmatpush2.msra.mxu0 0.0
  %889 = vmatprep.subr.mxu0 0.0
  %890 = vmatpush2.msra.mxu0 0.0
  %891 = vmatprep.subr.mxu0 0.0
  %892 = vmatpush2.msra.mxu0 0.0
  %893 = vmatprep.subr.mxu0 0.0
  %894 = vmatpush2.msra.mxu0 0.0
  %895 = vmatprep.subr.mxu0 0.0
  %896 = vmatpush2.msra.mxu0 0.0
  %897 = vmatprep.subr.mxu0 0.0
  %898 = vmatpush2.msra.mxu0 0.0
  %899 = vmatprep.subr.mxu0 0.0
  %900 = vmatpush2.msra.mxu0 0.0
  %901 = vmatprep.subr.mxu0 0.0
  %902 = vmatpush2.msra.mxu0 0.0
  %903 = vmatprep.subr.mxu0 0.0
  %904 = vmatpush2.msra.mxu0 0.0
  %905 = vmatprep.subr.mxu0 0.0
  %906 = vmatpush2.msra.mxu0 0.0
  %907 = vmatprep.subr.mxu0 0.0
  %908 = vmatpush2.msra.mxu0 0.0
  %909 = vmatprep.subr.mxu0 0.0
  %910 = vmatpush2.msra.mxu0 0.0
  %911 = vmatprep.subr.mxu0 0.0
  %912 = vmatpush2.msra.mxu0 0.0
  %913 = vmatprep.mubr.f32.mxu0 0.0
  %914 = vmatmul.mubr.f32.gmra.mxu0 %v799
  %v915 = vpop.f32.mrf.mxu0
  %v916 = vadd.f32 %v719, %v915
  %v917 = vpop.f32.mrf.mxu0
  %918 = vmatprep.mubr.f32.mxu0 0.0
  %919 = vmatmul.mubr.f32.gmra.mxu0 %v802
  %v920 = vpop.f32.mrf.mxu0
  %v921 = vadd.f32 %v724, %v920
  %v922 = vpop.f32.mrf.mxu0
  %923 = vmatprep.mubr.f32.mxu0 0.0
  %924 = vmatmul.mubr.f32.gmra.mxu0 %v805
  %v925 = vpop.f32.mrf.mxu0
  %v926 = vadd.f32 %v729, %v925
  %v927 = vpop.f32.mrf.mxu0
  %928 = vmatprep.mubr.f32.mxu0 0.0
  %929 = vmatmul.mubr.f32.gmra.mxu0 %v808
  %v930 = vpop.f32.mrf.mxu0
  %v931 = vadd.f32 %v734, %v930
  %v932 = vpop.f32.mrf.mxu0
  %933 = vmatprep.mubr.f32.mxu0 0.0
  %934 = vmatmul.mubr.f32.gmra.mxu0 %v811
  %v935 = vpop.f32.mrf.mxu0
  %v936 = vadd.f32 %v739, %v935
  %v937 = vpop.f32.mrf.mxu0
  %938 = vmatprep.mubr.f32.mxu0 0.0
  %939 = vmatmul.mubr.f32.gmra.mxu0 %v814
  %v940 = vpop.f32.mrf.mxu0
  %v941 = vadd.f32 %v744, %v940
  %v942 = vpop.f32.mrf.mxu0
  %943 = vmatprep.mubr.f32.mxu0 0.0
  %944 = vmatmul.mubr.f32.gmra.mxu0 %v817
  %v945 = vpop.f32.mrf.mxu0
  %v946 = vadd.f32 %v749, %v945
  %v947 = vpop.f32.mrf.mxu0
  %948 = vmatprep.mubr.f32.mxu0 0.0
  %949 = vmatmul.mubr.f32.gmra.mxu0 %v820
  %v950 = vpop.f32.mrf.mxu0
  %v951 = vadd.f32 %v754, %v950
  %v952 = vpop.f32.mrf.mxu0
  %953 = vmatprep.mubr.f32.mxu0 0.0
  %954 = vmatmul.mubr.f32.gmra.mxu0 %v823
  %v955 = vpop.f32.mrf.mxu0
  %v956 = vadd.f32 %v759, %v955
  %v957 = vpop.f32.mrf.mxu0
  %958 = vmatprep.mubr.f32.mxu0 0.0
  %959 = vmatmul.mubr.f32.gmra.mxu0 %v826
  %v960 = vpop.f32.mrf.mxu0
  %v961 = vadd.f32 %v764, %v960
  %v962 = vpop.f32.mrf.mxu0
  %963 = vmatprep.mubr.f32.mxu0 0.0
  %964 = vmatmul.mubr.f32.gmra.mxu0 %v829
  %v965 = vpop.f32.mrf.mxu0
  %v966 = vadd.f32 %v769, %v965
  %v967 = vpop.f32.mrf.mxu0
  %968 = vmatprep.mubr.f32.mxu0 0.0
  %969 = vmatmul.mubr.f32.gmra.mxu0 %v832
  %v970 = vpop.f32.mrf.mxu0
  %v971 = vadd.f32 %v774, %v970
  %v972 = vpop.f32.mrf.mxu0
  %973 = vmatprep.mubr.f32.mxu0 0.0
  %974 = vmatmul.mubr.f32.gmra.mxu0 %v835
  %v975 = vpop.f32.mrf.mxu0
  %v976 = vadd.f32 %v779, %v975
  %v977 = vpop.f32.mrf.mxu0
  %978 = vmatprep.mubr.f32.mxu0 0.0
  %979 = vmatmul.mubr.f32.gmra.mxu0 %v838
  %v980 = vpop.f32.mrf.mxu0
  %v981 = vadd.f32 %v784, %v980
  %v982 = vpop.f32.mrf.mxu0
  %983 = vmatprep.mubr.f32.mxu0 0.0
  %984 = vmatmul.mubr.f32.gmra.mxu0 %v841
  %v985 = vpop.f32.mrf.mxu0
  %v986 = vadd.f32 %v789, %v985
  %v987 = vpop.f32.mrf.mxu0
  %988 = vmatprep.mubr.f32.mxu0 0.0
  %989 = vmatmul.mubr.f32.gmra.mxu0 %v844
  %v990 = vpop.f32.mrf.mxu0
  %v991 = vadd.f32 %v794, %v990
  %v992 = vpop.f32.mrf.mxu0
  %993 = vdwg.mxu0
  %v994 = vld [vmem:[%s8] sm:$0x1]
  %v996 = vlaneseq
  %v997 = vshrl.u32 %v996, 7
  %v998 = vsub.s32 0, %v997
  %v999 = vrot.slane %v994, %v998
  %v1001 = vadd.f32 %v916, %v999
  %v1002 = vadd.f32 %v921, %v999
  %v1003 = vadd.f32 %v926, %v999
  %v1004 = vadd.f32 %v931, %v999
  %v1005 = vadd.f32 %v936, %v999
  %v1006 = vadd.f32 %v941, %v999
  %v1007 = vadd.f32 %v946, %v999
  %v1008 = vadd.f32 %v951, %v999
  %v1009 = vadd.f32 %v956, %v999
  %v1010 = vadd.f32 %v961, %v999
  %v1011 = vadd.f32 %v966, %v999
  %v1012 = vadd.f32 %v971, %v999
  %v1013 = vadd.f32 %v976, %v999
  %v1014 = vadd.f32 %v981, %v999
  %v1015 = vadd.f32 %v986, %v999
  %v1016 = vadd.f32 %v991, %v999
  %v1017 = vmax.f32 %v1001, 0.0
  %v1018 = vmax.f32 %v1002, 0.0
  %v1019 = vmax.f32 %v1003, 0.0
  %v1020 = vmax.f32 %v1004, 0.0
  %v1021 = vmax.f32 %v1005, 0.0
  %v1022 = vmax.f32 %v1006, 0.0
  %v1023 = vmax.f32 %v1007, 0.0
  %v1024 = vmax.f32 %v1008, 0.0
  %v1025 = vmax.f32 %v1009, 0.0
  %v1026 = vmax.f32 %v1010, 0.0
  %v1027 = vmax.f32 %v1011, 0.0
  %v1028 = vmax.f32 %v1012, 0.0
  %v1029 = vmax.f32 %v1013, 0.0
  %v1030 = vmax.f32 %v1014, 0.0
  %v1031 = vmax.f32 %v1015, 0.0
  %v1032 = vmax.f32 %v1016, 0.0
  %v1033 = vld [vmem:[%s9] sm:$0xff]
  %v1034 = vld [vmem:[%s9 + $0x8] sm:$0xff]
  %v1035 = vld [vmem:[%s9 + $0x10] sm:$0xff]
  %v1036 = vld [vmem:[%s9 + $0x18] sm:$0xff]
  %v1037 = vld [vmem:[%s9 + $0x20] sm:$0xff]
  %v1038 = vld [vmem:[%s9 + $0x28] sm:$0xff]
  %v1039 = vld [vmem:[%s9 + $0x30] sm:$0xff]
  %v1040 = vld [vmem:[%s9 + $0x38] sm:$0xff]
  %v1041 = vld [vmem:[%s10] sm:$0x1]
  %v1043 = vlaneseq
  %v1044 = vshrl.u32 %v1043, 7
  %v1045 = vsub.s32 0, %v1044
  %v1046 = vrot.slane %v1041, %v1045
  %vm1048 = vcmask 523264
  %v1050 = vsel %vm1048, %v1017, 0
  %v1053 = vsel %vm1048, %v1018, 0
  %v1056 = vsel %vm1048, %v1019, 0
  %v1059 = vsel %vm1048, %v1020, 0
  %v1062 = vsel %vm1048, %v1021, 0
  %v1065 = vsel %vm1048, %v1022, 0
  %v1068 = vsel %vm1048, %v1023, 0
  %v1071 = vsel %vm1048, %v1024, 0
  %v1074 = vsel %vm1048, %v1025, 0
  %v1077 = vsel %vm1048, %v1026, 0
  %v1080 = vsel %vm1048, %v1027, 0
  %v1083 = vsel %vm1048, %v1028, 0
  %v1086 = vsel %vm1048, %v1029, 0
  %v1089 = vsel %vm1048, %v1030, 0
  %v1092 = vsel %vm1048, %v1031, 0
  %v1095 = vsel %vm1048, %v1032, 0
  %1097 = vmatprep.subr.mxu0 0.0
  %1098 = vmatpush1.msra.mxu0 0.0
  %1099 = vmatprep.subr.mxu0 0.0
  %1100 = vmatpush1.msra.mxu0 0.0
  %1101 = vmatprep.subr.mxu0 0.0
  %1102 = vmatpush1.msra.mxu0 0.0
  %1103 = vmatprep.subr.mxu0 0.0
  %1104 = vmatpush1.msra.mxu0 0.0
  %1105 = vmatprep.subr.mxu0 0.0
  %1106 = vmatpush1.msra.mxu0 0.0
  %1107 = vmatprep.subr.mxu0 0.0
  %1108 = vmatpush1.msra.mxu0 0.0
  %1109 = vmatprep.subr.mxu0 0.0
  %1110 = vmatpush1.msra.mxu0 0.0
  %1111 = vmatprep.subr.mxu0 0.0
  %1112 = vmatpush1.msra.mxu0 0.0
  %1113 = vmatprep.subr.mxu0 0.0
  %1114 = vmatpush1.msra.mxu0 %v1040
  %1115 = vmatprep.subr.mxu0 0.0
  %1116 = vmatpush1.msra.mxu0 %v1039
  %1117 = vmatprep.subr.mxu0 0.0
  %1118 = vmatpush1.msra.mxu0 %v1038
  %1119 = vmatprep.subr.mxu0 0.0
  %1120 = vmatpush1.msra.mxu0 %v1037
  %1121 = vmatprep.subr.mxu0 0.0
  %1122 = vmatpush1.msra.mxu0 %v1036
  %1123 = vmatprep.subr.mxu0 0.0
  %1124 = vmatpush1.msra.mxu0 %v1035
  %1125 = vmatprep.subr.mxu0 0.0
  %1126 = vmatpush1.msra.mxu0 %v1034
  %1127 = vmatprep.subr.mxu0 0.0
  %1128 = vmatpush1.msra.mxu0 %v1033
  %1129 = vmatprep.subr.mxu0 0.0
  %1130 = vmatpush2.msra.mxu0 0.0
  %1131 = vmatprep.subr.mxu0 0.0
  %1132 = vmatpush2.msra.mxu0 0.0
  %1133 = vmatprep.subr.mxu0 0.0
  %1134 = vmatpush2.msra.mxu0 0.0
  %1135 = vmatprep.subr.mxu0 0.0
  %1136 = vmatpush2.msra.mxu0 0.0
  %1137 = vmatprep.subr.mxu0 0.0
  %1138 = vmatpush2.msra.mxu0 0.0
  %1139 = vmatprep.subr.mxu0 0.0
  %1140 = vmatpush2.msra.mxu0 0.0
  %1141 = vmatprep.subr.mxu0 0.0
  %1142 = vmatpush2.msra.mxu0 0.0
  %1143 = vmatprep.subr.mxu0 0.0
  %1144 = vmatpush2.msra.mxu0 0.0
  %1145 = vmatprep.subr.mxu0 0.0
  %1146 = vmatpush2.msra.mxu0 0.0
  %1147 = vmatprep.subr.mxu0 0.0
  %1148 = vmatpush2.msra.mxu0 0.0
  %1149 = vmatprep.subr.mxu0 0.0
  %1150 = vmatpush2.msra.mxu0 0.0
  %1151 = vmatprep.subr.mxu0 0.0
  %1152 = vmatpush2.msra.mxu0 0.0
  %1153 = vmatprep.subr.mxu0 0.0
  %1154 = vmatpush2.msra.mxu0 0.0
  %1155 = vmatprep.subr.mxu0 0.0
  %1156 = vmatpush2.msra.mxu0 0.0
  %1157 = vmatprep.subr.mxu0 0.0
  %1158 = vmatpush2.msra.mxu0 0.0
  %1159 = vmatprep.subr.mxu0 0.0
  %1160 = vmatpush2.msra.mxu0 0.0
  %1161 = vmatprep.mubr.f32.mxu0 0.0
  %1162 = vmatmul.mubr.f32.gmra.mxu0 %v1050
  %v1163 = vpop.f32.mrf.mxu0
  %v1164 = vadd.f32 %v1046, %v1163
  %v1165 = vpop.f32.mrf.mxu0
  %1166 = vmatprep.mubr.f32.mxu0 0.0
  %1167 = vmatmul.mubr.f32.gmra.mxu0 %v1053
  %v1168 = vpop.f32.mrf.mxu0
  %v1169 = vadd.f32 %v1046, %v1168
  %v1170 = vpop.f32.mrf.mxu0
  %1171 = vmatprep.mubr.f32.mxu0 0.0
  %1172 = vmatmul.mubr.f32.gmra.mxu0 %v1056
  %v1173 = vpop.f32.mrf.mxu0
  %v1174 = vadd.f32 %v1046, %v1173
  %v1175 = vpop.f32.mrf.mxu0
  %1176 = vmatprep.mubr.f32.mxu0 0.0
  %1177 = vmatmul.mubr.f32.gmra.mxu0 %v1059
  %v1178 = vpop.f32.mrf.mxu0
  %v1179 = vadd.f32 %v1046, %v1178
  %v1180 = vpop.f32.mrf.mxu0
  %1181 = vmatprep.mubr.f32.mxu0 0.0
  %1182 = vmatmul.mubr.f32.gmra.mxu0 %v1062
  %v1183 = vpop.f32.mrf.mxu0
  %v1184 = vadd.f32 %v1046, %v1183
  %v1185 = vpop.f32.mrf.mxu0
  %1186 = vmatprep.mubr.f32.mxu0 0.0
  %1187 = vmatmul.mubr.f32.gmra.mxu0 %v1065
  %v1188 = vpop.f32.mrf.mxu0
  %v1189 = vadd.f32 %v1046, %v1188
  %v1190 = vpop.f32.mrf.mxu0
  %1191 = vmatprep.mubr.f32.mxu0 0.0
  %1192 = vmatmul.mubr.f32.gmra.mxu0 %v1068
  %v1193 = vpop.f32.mrf.mxu0
  %v1194 = vadd.f32 %v1046, %v1193
  %v1195 = vpop.f32.mrf.mxu0
  %1196 = vmatprep.mubr.f32.mxu0 0.0
  %1197 = vmatmul.mubr.f32.gmra.mxu0 %v1071
  %v1198 = vpop.f32.mrf.mxu0
  %v1199 = vadd.f32 %v1046, %v1198
  %v1200 = vpop.f32.mrf.mxu0
  %1201 = vmatprep.mubr.f32.mxu0 0.0
  %1202 = vmatmul.mubr.f32.gmra.mxu0 %v1074
  %v1203 = vpop.f32.mrf.mxu0
  %v1204 = vadd.f32 %v1046, %v1203
  %v1205 = vpop.f32.mrf.mxu0
  %1206 = vmatprep.mubr.f32.mxu0 0.0
  %1207 = vmatmul.mubr.f32.gmra.mxu0 %v1077
  %v1208 = vpop.f32.mrf.mxu0
  %v1209 = vadd.f32 %v1046, %v1208
  %v1210 = vpop.f32.mrf.mxu0
  %1211 = vmatprep.mubr.f32.mxu0 0.0
  %1212 = vmatmul.mubr.f32.gmra.mxu0 %v1080
  %v1213 = vpop.f32.mrf.mxu0
  %v1214 = vadd.f32 %v1046, %v1213
  %v1215 = vpop.f32.mrf.mxu0
  %1216 = vmatprep.mubr.f32.mxu0 0.0
  %1217 = vmatmul.mubr.f32.gmra.mxu0 %v1083
  %v1218 = vpop.f32.mrf.mxu0
  %v1219 = vadd.f32 %v1046, %v1218
  %v1220 = vpop.f32.mrf.mxu0
  %1221 = vmatprep.mubr.f32.mxu0 0.0
  %1222 = vmatmul.mubr.f32.gmra.mxu0 %v1086
  %v1223 = vpop.f32.mrf.mxu0
  %v1224 = vadd.f32 %v1046, %v1223
  %v1225 = vpop.f32.mrf.mxu0
  %1226 = vmatprep.mubr.f32.mxu0 0.0
  %1227 = vmatmul.mubr.f32.gmra.mxu0 %v1089
  %v1228 = vpop.f32.mrf.mxu0
  %v1229 = vadd.f32 %v1046, %v1228
  %v1230 = vpop.f32.mrf.mxu0
  %1231 = vmatprep.mubr.f32.mxu0 0.0
  %1232 = vmatmul.mubr.f32.gmra.mxu0 %v1092
  %v1233 = vpop.f32.mrf.mxu0
  %v1234 = vadd.f32 %v1046, %v1233
  %v1235 = vpop.f32.mrf.mxu0
  %1236 = vmatprep.mubr.f32.mxu0 0.0
  %1237 = vmatmul.mubr.f32.gmra.mxu0 %v1095
  %v1238 = vpop.f32.mrf.mxu0
  %v1239 = vadd.f32 %v1046, %v1238
  %v1240 = vpop.f32.mrf.mxu0
  %1241 = vdwg.mxu0
  %v1242 = vmax.f32 %v1164, 0.0
  %v1243 = vmax.f32 %v1169, 0.0
  %v1244 = vmax.f32 %v1174, 0.0
  %v1245 = vmax.f32 %v1179, 0.0
  %v1246 = vmax.f32 %v1184, 0.0
  %v1247 = vmax.f32 %v1189, 0.0
  %v1248 = vmax.f32 %v1194, 0.0
  %v1249 = vmax.f32 %v1199, 0.0
  %v1250 = vmax.f32 %v1204, 0.0
  %v1251 = vmax.f32 %v1209, 0.0
  %v1252 = vmax.f32 %v1214, 0.0
  %v1253 = vmax.f32 %v1219, 0.0
  %v1254 = vmax.f32 %v1224, 0.0
  %v1255 = vmax.f32 %v1229, 0.0
  %v1256 = vmax.f32 %v1234, 0.0
  %v1257 = vmax.f32 %v1239, 0.0
  %v1258 = vld [vmem:[%s11] sm:$0xff]
  %v1259 = vld [vmem:[%s11 + $0x8] sm:$0xff]
  %v1260 = vld [vmem:[%s11 + $0x10] sm:$0xff]
  %v1261 = vld [vmem:[%s11 + $0x18] sm:$0xff]
  %v1262 = vld [vmem:[%s12] sm:$0x1]
  %v1264 = vlaneseq
  %v1265 = vshrl.u32 %v1264, 7
  %v1266 = vsub.s32 0, %v1265
  %v1267 = vrot.slane %v1262, %v1266
  %v1270 = vsel %vm603, %v1242, 0
  %v1273 = vsel %vm603, %v1243, 0
  %v1276 = vsel %vm603, %v1244, 0
  %v1279 = vsel %vm603, %v1245, 0
  %v1282 = vsel %vm603, %v1246, 0
  %v1285 = vsel %vm603, %v1247, 0
  %v1288 = vsel %vm603, %v1248, 0
  %v1291 = vsel %vm603, %v1249, 0
  %v1294 = vsel %vm603, %v1250, 0
  %v1297 = vsel %vm603, %v1251, 0
  %v1300 = vsel %vm603, %v1252, 0
  %v1303 = vsel %vm603, %v1253, 0
  %v1306 = vsel %vm603, %v1254, 0
  %v1309 = vsel %vm603, %v1255, 0
  %v1312 = vsel %vm603, %v1256, 0
  %v1315 = vsel %vm603, %v1257, 0
  %1317 = vmatprep.subr.mxu0 0.0
  %1318 = vmatpush1.msra.mxu0 0.0
  %1319 = vmatprep.subr.mxu0 0.0
  %1320 = vmatpush1.msra.mxu0 0.0
  %1321 = vmatprep.subr.mxu0 0.0
  %1322 = vmatpush1.msra.mxu0 0.0
  %1323 = vmatprep.subr.mxu0 0.0
  %1324 = vmatpush1.msra.mxu0 0.0
  %1325 = vmatprep.subr.mxu0 0.0
  %1326 = vmatpush1.msra.mxu0 0.0
  %1327 = vmatprep.subr.mxu0 0.0
  %1328 = vmatpush1.msra.mxu0 0.0
  %1329 = vmatprep.subr.mxu0 0.0
  %1330 = vmatpush1.msra.mxu0 0.0
  %1331 = vmatprep.subr.mxu0 0.0
  %1332 = vmatpush1.msra.mxu0 0.0
  %1333 = vmatprep.subr.mxu0 0.0
  %1334 = vmatpush1.msra.mxu0 0.0
  %1335 = vmatprep.subr.mxu0 0.0
  %1336 = vmatpush1.msra.mxu0 0.0
  %1337 = vmatprep.subr.mxu0 0.0
  %1338 = vmatpush1.msra.mxu0 0.0
  %1339 = vmatprep.subr.mxu0 0.0
  %1340 = vmatpush1.msra.mxu0 0.0
  %1341 = vmatprep.subr.mxu0 0.0
  %1342 = vmatpush1.msra.mxu0 %v1261
  %1343 = vmatprep.subr.mxu0 0.0
  %1344 = vmatpush1.msra.mxu0 %v1260
  %1345 = vmatprep.subr.mxu0 0.0
  %1346 = vmatpush1.msra.mxu0 %v1259
  %1347 = vmatprep.subr.mxu0 0.0
  %1348 = vmatpush1.msra.mxu0 %v1258
  %1349 = vmatprep.subr.mxu0 0.0
  %1350 = vmatpush2.msra.mxu0 0.0
  %1351 = vmatprep.subr.mxu0 0.0
  %1352 = vmatpush2.msra.mxu0 0.0
  %1353 = vmatprep.subr.mxu0 0.0
  %1354 = vmatpush2.msra.mxu0 0.0
  %1355 = vmatprep.subr.mxu0 0.0
  %1356 = vmatpush2.msra.mxu0 0.0
  %1357 = vmatprep.subr.mxu0 0.0
  %1358 = vmatpush2.msra.mxu0 0.0
  %1359 = vmatprep.subr.mxu0 0.0
  %1360 = vmatpush2.msra.mxu0 0.0
  %1361 = vmatprep.subr.mxu0 0.0
  %1362 = vmatpush2.msra.mxu0 0.0
  %1363 = vmatprep.subr.mxu0 0.0
  %1364 = vmatpush2.msra.mxu0 0.0
  %1365 = vmatprep.subr.mxu0 0.0
  %1366 = vmatpush2.msra.mxu0 0.0
  %1367 = vmatprep.subr.mxu0 0.0
  %1368 = vmatpush2.msra.mxu0 0.0
  %1369 = vmatprep.subr.mxu0 0.0
  %1370 = vmatpush2.msra.mxu0 0.0
  %1371 = vmatprep.subr.mxu0 0.0
  %1372 = vmatpush2.msra.mxu0 0.0
  %1373 = vmatprep.subr.mxu0 0.0
  %1374 = vmatpush2.msra.mxu0 0.0
  %1375 = vmatprep.subr.mxu0 0.0
  %1376 = vmatpush2.msra.mxu0 0.0
  %1377 = vmatprep.subr.mxu0 0.0
  %1378 = vmatpush2.msra.mxu0 0.0
  %1379 = vmatprep.subr.mxu0 0.0
  %1380 = vmatpush2.msra.mxu0 0.0
  %1381 = vmatprep.mubr.f32.mxu0 0.0
  %1382 = vmatmul.mubr.f32.gmra.mxu0 %v1270
  %v1383 = vpop.f32.mrf.mxu0
  %v1384 = vadd.f32 %v1267, %v1383
  %v1385 = vpop.f32.mrf.mxu0
  %1386 = vmatprep.mubr.f32.mxu0 0.0
  %1387 = vmatmul.mubr.f32.gmra.mxu0 %v1273
  %v1388 = vpop.f32.mrf.mxu0
  %v1389 = vadd.f32 %v1267, %v1388
  %v1390 = vpop.f32.mrf.mxu0
  %1391 = vmatprep.mubr.f32.mxu0 0.0
  %1392 = vmatmul.mubr.f32.gmra.mxu0 %v1276
  %v1393 = vpop.f32.mrf.mxu0
  %v1394 = vadd.f32 %v1267, %v1393
  %v1395 = vpop.f32.mrf.mxu0
  %1396 = vmatprep.mubr.f32.mxu0 0.0
  %1397 = vmatmul.mubr.f32.gmra.mxu0 %v1279
  %v1398 = vpop.f32.mrf.mxu0
  %v1399 = vadd.f32 %v1267, %v1398
  %v1400 = vpop.f32.mrf.mxu0
  %1401 = vmatprep.mubr.f32.mxu0 0.0
  %1402 = vmatmul.mubr.f32.gmra.mxu0 %v1282
  %v1403 = vpop.f32.mrf.mxu0
  %v1404 = vadd.f32 %v1267, %v1403
  %v1405 = vpop.f32.mrf.mxu0
  %1406 = vmatprep.mubr.f32.mxu0 0.0
  %1407 = vmatmul.mubr.f32.gmra.mxu0 %v1285
  %v1408 = vpop.f32.mrf.mxu0
  %v1409 = vadd.f32 %v1267, %v1408
  %v1410 = vpop.f32.mrf.mxu0
  %1411 = vmatprep.mubr.f32.mxu0 0.0
  %1412 = vmatmul.mubr.f32.gmra.mxu0 %v1288
  %v1413 = vpop.f32.mrf.mxu0
  %v1414 = vadd.f32 %v1267, %v1413
  %v1415 = vpop.f32.mrf.mxu0
  %1416 = vmatprep.mubr.f32.mxu0 0.0
  %1417 = vmatmul.mubr.f32.gmra.mxu0 %v1291
  %v1418 = vpop.f32.mrf.mxu0
  %v1419 = vadd.f32 %v1267, %v1418
  %v1420 = vpop.f32.mrf.mxu0
  %1421 = vmatprep.mubr.f32.mxu0 0.0
  %1422 = vmatmul.mubr.f32.gmra.mxu0 %v1294
  %v1423 = vpop.f32.mrf.mxu0
  %v1424 = vadd.f32 %v1267, %v1423
  %v1425 = vpop.f32.mrf.mxu0
  %1426 = vmatprep.mubr.f32.mxu0 0.0
  %1427 = vmatmul.mubr.f32.gmra.mxu0 %v1297
  %v1428 = vpop.f32.mrf.mxu0
  %v1429 = vadd.f32 %v1267, %v1428
  %v1430 = vpop.f32.mrf.mxu0
  %1431 = vmatprep.mubr.f32.mxu0 0.0
  %1432 = vmatmul.mubr.f32.gmra.mxu0 %v1300
  %v1433 = vpop.f32.mrf.mxu0
  %v1434 = vadd.f32 %v1267, %v1433
  %v1435 = vpop.f32.mrf.mxu0
  %1436 = vmatprep.mubr.f32.mxu0 0.0
  %1437 = vmatmul.mubr.f32.gmra.mxu0 %v1303
  %v1438 = vpop.f32.mrf.mxu0
  %v1439 = vadd.f32 %v1267, %v1438
  %v1440 = vpop.f32.mrf.mxu0
  %1441 = vmatprep.mubr.f32.mxu0 0.0
  %1442 = vmatmul.mubr.f32.gmra.mxu0 %v1306
  %v1443 = vpop.f32.mrf.mxu0
  %v1444 = vadd.f32 %v1267, %v1443
  %v1445 = vpop.f32.mrf.mxu0
  %1446 = vmatprep.mubr.f32.mxu0 0.0
  %1447 = vmatmul.mubr.f32.gmra.mxu0 %v1309
  %v1448 = vpop.f32.mrf.mxu0
  %v1449 = vadd.f32 %v1267, %v1448
  %v1450 = vpop.f32.mrf.mxu0
  %1451 = vmatprep.mubr.f32.mxu0 0.0
  %1452 = vmatmul.mubr.f32.gmra.mxu0 %v1312
  %v1453 = vpop.f32.mrf.mxu0
  %v1454 = vadd.f32 %v1267, %v1453
  %v1455 = vpop.f32.mrf.mxu0
  %1456 = vmatprep.mubr.f32.mxu0 0.0
  %1457 = vmatmul.mubr.f32.gmra.mxu0 %v1315
  %v1458 = vpop.f32.mrf.mxu0
  %v1459 = vadd.f32 %v1267, %v1458
  %v1460 = vpop.f32.mrf.mxu0
  %1461 = vdwg.mxu0
  %v1462 = vlaneseq
  %v1463 = vand.u32 %v1462, 127
  %vm1464 = vcmp.lt.s32.totalorder %v1463, 9
  %v1465 = vtanh.pop %v1384
  %v1466 = vtanh.pop %v1389
  %v1467 = vtanh.pop %v1394
  %v1468 = vtanh.pop %v1399
  %v1469 = vtanh.pop %v1404
  %v1470 = vtanh.pop %v1409
  %v1471 = vtanh.pop %v1414
  %v1472 = vtanh.pop %v1419
  %v1473 = vtanh.pop %v1424
  %v1474 = vtanh.pop %v1429
  %v1475 = vtanh.pop %v1434
  %v1476 = vtanh.pop %v1439
  %v1477 = vtanh.pop %v1444
  %v1478 = vtanh.pop %v1449
  %v1479 = vtanh.pop %v1454
  %v1480 = vtanh.pop %v1459
  %v1481 = vmax.f32 %v1384, 0.0
  %v1482 = vmax.f32 %v1389, 0.0
  %v1483 = vmax.f32 %v1394, 0.0
  %v1484 = vmax.f32 %v1399, 0.0
  %v1485 = vmax.f32 %v1404, 0.0
  %v1486 = vmax.f32 %v1409, 0.0
  %v1487 = vmax.f32 %v1414, 0.0
  %v1488 = vmax.f32 %v1419, 0.0
  %v1489 = vmax.f32 %v1424, 0.0
  %v1490 = vmax.f32 %v1429, 0.0
  %v1491 = vmax.f32 %v1434, 0.0
  %v1492 = vmax.f32 %v1439, 0.0
  %v1493 = vmax.f32 %v1444, 0.0
  %v1494 = vmax.f32 %v1449, 0.0
  %v1495 = vmax.f32 %v1454, 0.0
  %v1496 = vmax.f32 %v1459, 0.0
  %v1497 = vsel %vm1464, %v1465, %v1481
  %v1498 = vsel %vm1464, %v1466, %v1482
  %v1499 = vsel %vm1464, %v1467, %v1483
  %v1500 = vsel %vm1464, %v1468, %v1484
  %v1501 = vsel %vm1464, %v1469, %v1485
  %v1502 = vsel %vm1464, %v1470, %v1486
  %v1503 = vsel %vm1464, %v1471, %v1487
  %v1504 = vsel %vm1464, %v1472, %v1488
  %v1505 = vsel %vm1464, %v1473, %v1489
  %v1506 = vsel %vm1464, %v1474, %v1490
  %v1507 = vsel %vm1464, %v1475, %v1491
  %v1508 = vsel %vm1464, %v1476, %v1492
  %v1509 = vsel %vm1464, %v1477, %v1493
  %v1510 = vsel %vm1464, %v1478, %v1494
  %v1511 = vsel %vm1464, %v1479, %v1495
  %v1512 = vsel %vm1464, %v1480, %v1496
  %vm1513 = vcmask 80896
  %1514 = vst.msk [vmem:[%s13] sm:$0xff] %vm1513, %v1497
  %1515 = vst.msk [vmem:[%s13 + $0x8] sm:$0xff] %vm1513, %v1498
  %1516 = vst.msk [vmem:[%s13 + $0x10] sm:$0xff] %vm1513, %v1499
  %1517 = vst.msk [vmem:[%s13 + $0x18] sm:$0xff] %vm1513, %v1500
  %1518 = vst.msk [vmem:[%s13 + $0x20] sm:$0xff] %vm1513, %v1501
  %1519 = vst.msk [vmem:[%s13 + $0x28] sm:$0xff] %vm1513, %v1502
  %1520 = vst.msk [vmem:[%s13 + $0x30] sm:$0xff] %vm1513, %v1503
  %1521 = vst.msk [vmem:[%s13 + $0x38] sm:$0xff] %vm1513, %v1504
  %1522 = vst.msk [vmem:[%s13 + $0x40] sm:$0xff] %vm1513, %v1505
  %1523 = vst.msk [vmem:[%s13 + $0x48] sm:$0xff] %vm1513, %v1506
  %1524 = vst.msk [vmem:[%s13 + $0x50] sm:$0xff] %vm1513, %v1507
  %1525 = vst.msk [vmem:[%s13 + $0x58] sm:$0xff] %vm1513, %v1508
  %1526 = vst.msk [vmem:[%s13 + $0x60] sm:$0xff] %vm1513, %v1509
  %1527 = vst.msk [vmem:[%s13 + $0x68] sm:$0xff] %vm1513, %v1510
  %1528 = vst.msk [vmem:[%s13 + $0x70] sm:$0xff] %vm1513, %v1511
  %1529 = vst.msk [vmem:[%s13 + $0x78] sm:$0xff] %vm1513, %v1512
  // Predicated region
  $region54: #{yopo_forward.1} parent=0 // pred_check
    _
  $region55: #{yopo_forward.1} parent=0 // pred_check_branch
    %1531 = sbr.rel (0) target = $region57
  $region56: #{yopo_forward.1} parent=0 // pred_region
    _
  $region57: #{yopo_forward.1} parent=0 // pred_fallthru
    _
  // Predicated region
  $region58: #{yopo_forward.1} parent=0 // pred_check
    _
  $region59: #{yopo_forward.1} parent=0 // pred_check_branch
    %1533 = sbr.rel (0) target = $region61
  $region60: #{yopo_forward.1} parent=0 // pred_region
    _
  $region61: #{yopo_forward.1} parent=0 // pred_fallthru
    _

</llo_original>
